<compile_context>
chip_gen: v5e
topology: v5e:2x2
jax: 0.10.0
libtpu: 0.0.40
codegen_flags: <defaults>
</compile_context>

<pallas_src>
import jax
import jax.numpy as jnp
from jax.experimental import pallas as pl
from jax.experimental.pallas import tpu as pltpu


def _round_up(x, m):
    return (x + m - 1) // m * m


def _cdiv(a, b):
    return (a + b - 1) // b


# --------------------------------------------------------------------------
# Fused Pallas kernel: all radius branches + shared post-MLP in one launch.
# --------------------------------------------------------------------------
def _make_fused_kernel(n_branches, n_mlps, s_list, n_post):
    """refs = (g_0..g_{nb-1}, f2,
               [w_t, b] * n_mlps[0], ..., [w_t, b] * n_mlps[nb-1],
               w0a_t, w0b_t, b0, [w_t, b] * (n_post - 1),
               out)
    All weights are pre-transposed: w_t is (cout, cin); biases are (cout, 1)."""

    def kernel(*refs):
        pos = 0
        g_refs = refs[pos:pos + n_branches]; pos += n_branches
        f2_ref = refs[pos]; pos += 1
        branch_w = []
        for b in range(n_branches):
            nw = 2 * n_mlps[b]
            branch_w.append(refs[pos:pos + nw]); pos += nw
        w0a_ref, w0b_ref, b0_ref = refs[pos:pos + 3]; pos += 3
        post_tail = refs[pos:pos + 2 * (n_post - 1)]; pos += 2 * (n_post - 1)
        o_ref = refs[pos]

        tm = f2_ref.shape[1]

        # Skip-feature contribution to post layer 0 is identical for every
        # branch (shared post_mlp) -> compute it once per tile.  (c0, tm) f32.
        f2_post = jnp.dot(w0b_ref[...], f2_ref[...],
                          preferred_element_type=jnp.float32)

        pooled_list = []
        for b in range(n_branches):
            s = s_list[b]
            pooled = None
            # Unrolled per-sample loop: g_ref[j] is a contiguous (Cin, tm) slab
            # (channels on sublanes, points on lanes); the max-pool becomes a
            # running lane-dense maximum -> no reshape relayout, no nsample
            # padding, tiny activation footprint.
            for j in range(s):
                x = g_refs[b][j]                              # (Cin, tm) bf16
                h = None
                for l in range(n_mlps[b]):
                    w = branch_w[b][2 * l]
                    bias = branch_w[b][2 * l + 1]
                    h = jnp.maximum(
                        jnp.dot(w[...], x, preferred_element_type=jnp.float32)
                        + bias[...], 0.0)                     # (cout, tm) f32
                    x = h.astype(jnp.bfloat16)
                pooled = h if pooled is None else jnp.maximum(pooled, h)
            pooled_list.append(pooled.astype(jnp.bfloat16))   # (c_mid, tm)

        # Fuse the branches' post-MLP: run each post layer once on
        # (c, n_branches * tm) instead of n_branches tiny dots.
        if n_branches == 1:
            pooled_all = pooled_list[0]
            f2_all = f2_post
        else:
            pooled_all = jnp.concatenate(pooled_list, axis=1)
            f2_all = jnp.concatenate([f2_post] * n_branches, axis=1)

        y = jnp.maximum(
            jnp.dot(w0a_ref[...], pooled_all, preferred_element_type=jnp.float32)
            + f2_all + b0_ref[...], 0.0)
        for l in range(n_post - 1):
            w = post_tail[2 * l]
            bias = post_tail[2 * l + 1]
            y = jnp.maximum(
                jnp.dot(w[...], y.astype(jnp.bfloat16),
                        preferred_element_type=jnp.float32) + bias[...], 0.0)

        c_out = y.shape[0]
        # Output is already (c_out, nb*tm): lane-dense stores, no transpose.
        # (If c_out is not a multiple of 8, the sublane slices below become
        #  masked stores — still correct, just slightly slower.)
        for b in range(n_branches):
            o_ref[b * c_out:(b + 1) * c_out, :] = \
                y[:, b * tm:(b + 1) * tm].astype(o_ref.dtype)

    return kernel


# --------------------------------------------------------------------------
# Wrapper around the fused kernel (tiling, padding, weight prep).
# --------------------------------------------------------------------------
def fused_forward(grouped_list, f2_cm, mlps_params, post_params, tm=1024):
    """grouped_list[b]: (S_b, Cin_b, M) f32 channel-major; f2_cm: (C2, M) f32.
    Returns (n_branches * c_out, M) channel-major f32."""
    c2, M = f2_cm.shape
    n_branches = len(grouped_list)
    n_mlps = [len(p) for p in mlps_params]
    assert all(n >= 1 for n in n_mlps)
    n_post = len(post_params)
    c_mid = mlps_params[0][-1][0].shape[1]
    assert all(p[-1][0].shape[1] == c_mid for p in mlps_params)
    assert post_params[0][0].shape[0] == c_mid + c2
    c_out = post_params[-1][0].shape[1]
    total_c = n_branches * c_out
    s_list = [g.shape[0] for g in grouped_list]
    cin_list = [g.shape[1] for g in grouped_list]

    # ------------------------------------------------------------------
    # Generation-aware VMEM budget (64 MiB on v7x, 128 MiB on v5e/v6e).
    # ------------------------------------------------------------------
    try:
        vmem_cap = int(pltpu.get_tpu_info().vmem_capacity_bytes)
    except Exception:
        vmem_cap = 64 << 20            # conservative fallback (v7x-sized)
    budget = (vmem_cap * 3) // 4       # 48 MiB on v7x, 96 MiB on v5e/v6e

    def r8(x):
        return _round_up(x, 8)

    def r16(x):
        return _round_up(x, 16)

    def r128(x):
        return _round_up(x, 128)

    def vmem_est(t):
        """Model actual TPU layout padding (sublane/lane round-up)."""
        est = 0
        for b in range(n_branches):
            # grouped tile (S, Cin, t) bf16: sublane dim Cin rounds to 16,
            # lane dim t is already a multiple of 128; double-buffered.
            est += 2 * s_list[b] * r16(cin_list[b]) * t * 2
        est += 2 * r16(c2) * t * 2                         # f2 bf16, double-buffered
        est += 2 * r8(total_c) * t * 4                     # output f32, double-buffered
        # weights/biases (small, but lane-padded to 128)
        for bp in list(mlps_params) + [post_params[0]] + list(post_params[1:]):
            pass
        for bp in mlps_params:
            for (w, _) in bp:
                est += 2 * (r16(w.shape[1]) * r128(w.shape[0]) * 2
                            + r8(w.shape[1]) * 128 * 4)
        for (w, _) in post_params:
            est += 2 * (r16(w.shape[1]) * r128(w.shape[0]) * 2
                        + r8(w.shape[1]) * 128 * 4)
        # compute temporaries
        c_max = max(max(w.shape[1] for (w, _) in mlps_params[b])
                    for b in range(n_branches))
        c_post_max = max(w.shape[1] for (w, _) in post_params)
        c0 = post_params[0][0].shape[1]
        act = t * (r8(c_max) * 6                          # per-sample h (f32 + bf16)
                   + n_branches * r8(c_mid) * 6           # pooled per branch
                   + n_branches * r8(c_mid) * 2           # pooled_all concat (bf16)
                   + (n_branches + 1) * r8(c0) * 4        # f2_post + lane-tiled copy
                   + 2 * n_branches * r8(c_post_max) * 6)  # post chain (f32 + bf16)
        return est + act

    # Tile-size selection: tm must be a multiple of 128 (lane dim).  Prefer
    # >= 4 grid steps and an even step count so both v7x TensorCores stay
    # pipelined and balanced.
    tm_eff = max(128, (min(int(tm), 2048) // 128) * 128)
    while tm_eff > 128 and vmem_est(tm_eff) > budget:
        tm_eff -= 128
    while tm_eff > 128 and _cdiv(M, tm_eff) < 4:
        tm_eff -= 128
    steps = _cdiv(M, tm_eff)
    if steps > 1 and steps % 2 == 1:
        t = tm_eff - 128
        while t >= 128:
            if _cdiv(M, t) % 2 == 0 and vmem_est(t) <= budget:
                tm_eff = t
                break
            t -= 128
    M_pad = _round_up(M, tm_eff)

    # Pad the point (lane) axis with zeros and cast MXU inputs to bf16.
    ins = []
    for g in grouped_list:
        if M_pad != M:
            g = jnp.pad(g, ((0, 0), (0, 0), (0, M_pad - M)))
        ins.append(g.astype(jnp.bfloat16))
    f2p = f2_cm
    if M_pad != M:
        f2p = jnp.pad(f2p, ((0, 0), (0, M_pad - M)))
    f2p = f2p.astype(jnp.bfloat16)

    # Weights: pre-transposed to (cout, cin) bf16, biases (cout, 1) f32.
    # Post layer 0 is split into the pooled part and the skip-features part.
    weights = []
    for bp in mlps_params:
        for (w, bias) in bp:
            weights.append(jnp.asarray(w).T.astype(jnp.bfloat16))
            weights.append(jnp.asarray(bias).reshape(-1, 1).astype(jnp.float32))
    w0, b0 = post_params[0]
    weights.append(jnp.asarray(w0[:c_mid, :]).T.astype(jnp.bfloat16))   # pooled part
    weights.append(jnp.asarray(w0[c_mid:, :]).T.astype(jnp.bfloat16))   # skip part
    weights.append(jnp.asarray(b0).reshape(-1, 1).astype(jnp.float32))
    for (w, bias) in post_params[1:]:
        weights.append(jnp.asarray(w).T.astype(jnp.bfloat16))
        weights.append(jnp.asarray(bias).reshape(-1, 1).astype(jnp.float32))

    # TODO(synk): on v5e, if the grouped DMA is exposed, add
    # pipeline_mode=pl.Buffered(3) to the grouped in_specs.
    in_specs = [pl.BlockSpec((s_list[b], cin_list[b], tm_eff),
                             lambda i: (0, 0, i))
                for b in range(n_branches)]
    in_specs.append(pl.BlockSpec((c2, tm_eff), lambda i: (0, i)))
    in_specs += [pl.BlockSpec(w.shape, lambda i: (0, 0)) for w in weights]

    flops = 0
    for b in range(n_branches):
        rows = M_pad * s_list[b]
        for (w, _) in mlps_params[b]:
            flops += 2 * rows * w.shape[0] * w.shape[1]
    for (w, _) in post_params:
        flops += 2 * n_branches * M_pad * w.shape[0] * w.shape[1]
    bytes_accessed = (sum(int(x.size) * x.dtype.itemsize for x in ins)
                      + int(f2p.size) * f2p.dtype.itemsize
                      + sum(int(w.size) * w.dtype.itemsize for w in weights)
                      + total_c * M_pad * 4)

    kernel = _make_fused_kernel(n_branches, n_mlps, s_list, n_post)
    out_cm = pl.pallas_call(
        kernel,
        out_shape=jax.ShapeDtypeStruct((total_c, M_pad), jnp.float32),
        grid=(M_pad // tm_eff,),
        in_specs=in_specs,
        out_specs=pl.BlockSpec((total_c, tm_eff), lambda i: (0, i)),
        compiler_params=pltpu.CompilerParams(
            dimension_semantics=("parallel",),
            vmem_limit_bytes=int(min(max(2 * vmem_est(tm_eff), 32 << 20),
                                     budget))),
        cost_estimate=pl.CostEstimate(flops=int(flops), transcendentals=0,
                                      bytes_accessed=int(bytes_accessed)),
    )(*ins, f2p, *weights)
    return out_cm[:, :M]


# --------------------------------------------------------------------------
# Glue: ball query + grouping (data-dependent gather -> plain JAX).
# Emits the grouped tensor directly in the kernel's channel-major layout.
# --------------------------------------------------------------------------
def ball_query_and_group_cf(xyz_src, xyz_query, feats_src_cf, radius, nsample):
    """Replicates pointnet2 QueryAndGroup(use_xyz=True) semantics.

    xyz_src:      (B, N1, 3)  points being grouped (xyz1)
    xyz_query:    (B, N2, 3)  query centers (xyz2)
    feats_src_cf: (B, C1, N1) channel-first features of xyz_src
    returns       (nsample, 3 + C1, B * N2) grouped relative-xyz ++ features
    """
    B, N1, _ = xyz_src.shape
    N2 = xyz_query.shape[1]
    C1 = feats_src_cf.shape[1]

    # ||q - s||^2 = ||q||^2 + ||s||^2 - 2 q.s  -> no (B, N2, N1, 3) temp,
    # dominant term runs on the MXU.
    qq = jnp.sum(xyz_query * xyz_query, axis=-1)                  # (B, N2)
    ss = jnp.sum(xyz_src * xyz_src, axis=-1)                      # (B, N1)
    cross = jnp.einsum('bqd,bkd->bqk', xyz_query, xyz_src)        # (B, N2, N1)
    d2 = qq[:, :, None] + ss[:, None, :] - 2.0 * cross

    within = d2 < radius * radius
    # CUDA ball_query: first `nsample` in-radius indices (in index order);
    # unfilled slots repeat the first found index; all zeros if none found.
    keys = jnp.where(within, jnp.arange(N1, dtype=jnp.int32)[None, None, :], N1)
    neg_top, _ = jax.lax.top_k(-keys, nsample)
    sel = -neg_top                                                # ascending order
    cnt = jnp.sum(within, axis=-1)                                # (B, N2)
    first = jnp.where(cnt[..., None] > 0, sel[..., :1], 0)
    k = jnp.arange(nsample)
    idx = jnp.where(k[None, None, :] < cnt[..., None], sel, first)  # (B, N2, S)

    # Gather straight into (S, C, B, N2) so no extra transpose of the big
    # grouped tensor is needed before the Pallas kernel.
    idx_t = jnp.transpose(idx, (2, 0, 1))                         # (S, B, N2)
    b_ix = jnp.arange(B)[None, None, :, None]                     # (1,1,B,1)
    c_ix = jnp.arange(C1)[None, :, None, None]                    # (1,C1,1,1)
    d_ix = jnp.arange(3)[None, :, None, None]                     # (1,3,1,1)
    i_ix = idx_t[:, None, :, :]                                   # (S,1,B,N2)
    g_f = feats_src_cf[b_ix, c_ix, i_ix]                          # (S,C1,B,N2)
    g_xyz = xyz_src[b_ix, i_ix, d_ix]                             # (S,3,B,N2)
    g_xyz = g_xyz - jnp.transpose(xyz_query, (2, 0, 1))[None]     # center on query
    grouped = jnp.concatenate([g_xyz, g_f], axis=1)               # (S,3+C1,B,N2)
    return grouped.reshape(nsample, 3 + C1, B * N2)


def pointnet_lfp_msg_forward(xyz2, xyz1, features2, features1, params,
                             radii, nsamples, tm=1024):
    """Matches PointnetLFPModuleMSG.forward.

    xyz2: (B, N2, 3), xyz1: (B, N1, 3)
    features2: (B, C2, N2), features1: (B, C1, N1)   (PyTorch channel-first)
    returns (B, len(radii) * post_mlp[-1], N2)
    """
    B, N2, _ = xyz2.shape
    C2 = features2.shape[1]
    M = B * N2
    f2_cm = jnp.transpose(features2, (1, 0, 2)).reshape(C2, M)    # (C2, B*N2)

    # TODO(synk): the grouped tensor is still materialized in HBM by this
    # plain-JAX gather; scalar-prefetching the ball-query indices and gathering
    # from a VMEM-resident features1 inside the kernel would remove one full
    # HBM pass (and block-diagonal sample packing would raise MXU utilization).
    grouped_list = []
    for radius, nsample in zip(radii, nsamples):
        grouped_list.append(
            ball_query_and_group_cf(xyz1, xyz2, features1, radius, nsample))

    out_cm = fused_forward(grouped_list, f2_cm, params["mlps"], params["post"],
                           tm=tm)                                 # (sumC, B*N2)
    total_c = out_cm.shape[0]
    return jnp.transpose(out_cm.reshape(total_c, B, N2), (1, 0, 2))


# --------------------------------------------------------------------------
# Deterministic parameter init (Conv2d 1x1 bias=False + eval-mode BN folded)
# --------------------------------------------------------------------------
def init_shared_mlp(key, channels):
    params = []
    eps = 1e-5
    for l in range(len(channels) - 1):
        key, kw, kg, kb = jax.random.split(key, 4)
        cin, cout = channels[l], channels[l + 1]
        w = 0.1 * jax.random.normal(kw, (cin, cout), jnp.float32)
        gamma = 1.0 + 0.1 * jax.random.normal(kg, (cout,), jnp.float32)
        beta = 0.1 * jax.random.normal(kb, (cout,), jnp.float32)
        run_mean = jnp.zeros((cout,), jnp.float32)
        run_var = jnp.ones((cout,), jnp.float32)
        scale = gamma / jnp.sqrt(run_var + eps)
        # TODO(synk): BN uses eval-mode (running stats) semantics; training-mode
        # batch statistics are not reproduced here.
        params.append((w * scale[None, :], beta - run_mean * scale))
    return key, params


# --------------------------------------------------------------------------
# Pure-JAX reference of the in-kernel compute (mirrors the bf16 matmul casts)
# --------------------------------------------------------------------------
def reference_forward(xyz2, xyz1, features2, features1, params, radii, nsamples):
    B, N2, _ = xyz2.shape
    M = B * N2
    f2_cl = jnp.transpose(features2, (0, 2, 1)).reshape(M, -1)
    outs = []
    for i, (radius, nsample) in enumerate(zip(radii, nsamples)):
        grouped = ball_query_and_group_cf(xyz1, xyz2, features1, radius, nsample)
        g_cl = jnp.transpose(grouped, (2, 0, 1)).reshape(M * nsample, -1)
        x = g_cl.astype(jnp.bfloat16)
        xf = None
        for (w, b) in params["mlps"][i]:
            xf = jnp.maximum(
                jnp.dot(x, w.astype(jnp.bfloat16),
                        preferred_element_type=jnp.float32) + b[None, :], 0.0)
            x = xf.astype(jnp.bfloat16)
        pooled = jnp.max(xf.reshape(M, nsample, -1), axis=1)
        y = jnp.concatenate([pooled, f2_cl], axis=-1)
        for (w, b) in params["post"]:
            y = jnp.maximum(
                jnp.dot(y.astype(jnp.bfloat16), w.astype(jnp.bfloat16),
                        preferred_element_type=jnp.float32) + b[None, :], 0.0)
        outs.append(y.reshape(B, N2, -1))
    return jnp.transpose(jnp.concatenate(outs, axis=-1), (0, 2, 1))


# --------------------------------------------------------------------------
if __name__ == "__main__":
    key = jax.random.PRNGKey(0)

    # Small shapes consistent with the module's forward.
    B, N1, N2, C1, C2 = 2, 32, 16, 4, 6
    radii = [0.4, 0.8]
    nsamples = [8, 16]
    # use_xyz=True -> mlp_spec[0] += 3
    mlps_spec = [[C1 + 3, 16, 32], [C1 + 3, 16, 32]]
    post_spec = [32 + C2, 32]        # post_mlp input = mlps[k][-1] + C2

    k1, k2, k3, k4, kp = jax.random.split(key, 5)
    xyz1 = jax.random.uniform(k1, (B, N1, 3), jnp.float32)
    xyz2 = jax.random.uniform(k2, (B, N2, 3), jnp.float32)
    features1 = jax.random.normal(k3, (B, C1, N1), jnp.float32)
    features2 = jax.random.normal(k4, (B, C2, N2), jnp.float32)

    params = {"mlps": [], "post": None}
    for spec in mlps_spec:
        kp, p = init_shared_mlp(kp, spec)
        params["mlps"].append(p)
    kp, params["post"] = init_shared_mlp(kp, post_spec)

    out = pointnet_lfp_msg_forward(xyz2, xyz1, features2, features1,
                                   params, radii, nsamples)
    out = jax.block_until_ready(out)
    assert out.shape == (B, len(radii) * post_spec[-1], N2), out.shape

    ref = reference_forward(xyz2, xyz1, features2, features1,
                            params, radii, nsamples)
    ref = jax.block_until_ready(ref)
    err = float(jnp.max(jnp.abs(out - ref)))
    assert jnp.allclose(out, ref, atol=2e-2, rtol=2e-2), err

    print("KERNEL_OK")
</pallas_src>

<mosaic_0001>
module attributes {stable_mosaic.version = 11 : i64} {
  func.func @kernel(%arg0: i32, %arg1: memref<8x7x128xbf16, #tpu.memory_space<vmem>>, %arg2: memref<16x7x128xbf16, #tpu.memory_space<vmem>>, %arg3: memref<6x128xbf16, #tpu.memory_space<vmem>>, %arg4: memref<16x7xbf16, #tpu.memory_space<vmem>>, %arg5: memref<16x1xf32, #tpu.memory_space<vmem>>, %arg6: memref<32x16xbf16, #tpu.memory_space<vmem>>, %arg7: memref<32x1xf32, #tpu.memory_space<vmem>>, %arg8: memref<16x7xbf16, #tpu.memory_space<vmem>>, %arg9: memref<16x1xf32, #tpu.memory_space<vmem>>, %arg10: memref<32x16xbf16, #tpu.memory_space<vmem>>, %arg11: memref<32x1xf32, #tpu.memory_space<vmem>>, %arg12: memref<32x32xbf16, #tpu.memory_space<vmem>>, %arg13: memref<32x6xbf16, #tpu.memory_space<vmem>>, %arg14: memref<32x1xf32, #tpu.memory_space<vmem>>, %arg15: memref<64x128xf32, #tpu.memory_space<vmem>>) attributes {dimension_semantics = [#tpu.dimension_semantics<parallel>], iteration_bounds = array<i64: 1>, scalar_prefetch = 0 : i64, scratch_operands = 0 : i64, tpu.core_type = #tpu.core_type<tc>, window_params = [{transform_indices = @transform_0, window_bounds = array<i64: 8, 7, 128>}, {transform_indices = @transform_1, window_bounds = array<i64: 16, 7, 128>}, {transform_indices = @transform_2, window_bounds = array<i64: 6, 128>}, {pipeline_mode = #tpu.pipeline_mode<synchronous>, transform_indices = @transform_3, window_bounds = array<i64: 16, 7>}, {pipeline_mode = #tpu.pipeline_mode<synchronous>, transform_indices = @transform_4, window_bounds = array<i64: 16, 1>}, {pipeline_mode = #tpu.pipeline_mode<synchronous>, transform_indices = @transform_5, window_bounds = array<i64: 32, 16>}, {pipeline_mode = #tpu.pipeline_mode<synchronous>, transform_indices = @transform_6, window_bounds = array<i64: 32, 1>}, {pipeline_mode = #tpu.pipeline_mode<synchronous>, transform_indices = @transform_7, window_bounds = array<i64: 16, 7>}, {pipeline_mode = #tpu.pipeline_mode<synchronous>, transform_indices = @transform_8, window_bounds = array<i64: 16, 1>}, {pipeline_mode = #tpu.pipeline_mode<synchronous>, transform_indices = @transform_9, window_bounds = array<i64: 32, 16>}, {pipeline_mode = #tpu.pipeline_mode<synchronous>, transform_indices = @transform_10, window_bounds = array<i64: 32, 1>}, {pipeline_mode = #tpu.pipeline_mode<synchronous>, transform_indices = @transform_11, window_bounds = array<i64: 32, 32>}, {pipeline_mode = #tpu.pipeline_mode<synchronous>, transform_indices = @transform_12, window_bounds = array<i64: 32, 6>}, {pipeline_mode = #tpu.pipeline_mode<synchronous>, transform_indices = @transform_13, window_bounds = array<i64: 32, 1>}, {transform_indices = @transform_14, window_bounds = array<i64: 64, 128>}]} {
    %c0 = arith.constant 0 : index
    %c0_0 = arith.constant 0 : index
    %0 = vector.load %arg13[%c0, %c0_0] : memref<32x6xbf16, #tpu.memory_space<vmem>>, vector<32x6xbf16>
    %c0_1 = arith.constant 0 : index
    %c0_2 = arith.constant 0 : index
    %1 = vector.load %arg3[%c0_1, %c0_2] : memref<6x128xbf16, #tpu.memory_space<vmem>>, vector<6x128xbf16>
    %cst = arith.constant dense<0.000000e+00> : vector<32x128xf32>
    %2 = tpu.matmul %0, %1, %cst {dimension_numbers = #tpu.dot_dimension_numbers<[1], [0], [0], [1], [0, 0, 1, 1], [], []>} : vector<32x6xbf16>, vector<6x128xbf16>, vector<32x128xf32> -> vector<32x128xf32>
    %c0_3 = arith.constant 0 : index
    %c0_4 = arith.constant 0 : index
    %c0_5 = arith.constant 0 : index
    %3 = vector.load %arg1[%c0_3, %c0_4, %c0_5] : memref<8x7x128xbf16, #tpu.memory_space<vmem>>, vector<1x7x128xbf16>
    %4 = vector.shape_cast %3 : vector<1x7x128xbf16> to vector<7x128xbf16>
    %c0_6 = arith.constant 0 : index
    %c0_7 = arith.constant 0 : index
    %5 = vector.load %arg4[%c0_6, %c0_7] : memref<16x7xbf16, #tpu.memory_space<vmem>>, vector<16x7xbf16>
    %cst_8 = arith.constant dense<0.000000e+00> : vector<16x128xf32>
    %6 = tpu.matmul %5, %4, %cst_8 {dimension_numbers = #tpu.dot_dimension_numbers<[1], [0], [0], [1], [0, 0, 1, 1], [], []>} : vector<16x7xbf16>, vector<7x128xbf16>, vector<16x128xf32> -> vector<16x128xf32>
    %c0_9 = arith.constant 0 : index
    %c0_10 = arith.constant 0 : index
    %7 = vector.load %arg5[%c0_9, %c0_10] : memref<16x1xf32, #tpu.memory_space<vmem>>, vector<16x1xf32>
    %8 = vector.broadcast %7 : vector<16x1xf32> to vector<16x128xf32>
    %9 = arith.addf %6, %8 : vector<16x128xf32>
    %cst_11 = arith.constant 0.000000e+00 : f32
    %10 = vector.broadcast %cst_11 : f32 to vector<16x128xf32>
    %11 = arith.maximumf %9, %10 : vector<16x128xf32>
    %12 = arith.truncf %11 : vector<16x128xf32> to vector<16x128xbf16>
    %c0_12 = arith.constant 0 : index
    %c0_13 = arith.constant 0 : index
    %13 = vector.load %arg6[%c0_12, %c0_13] : memref<32x16xbf16, #tpu.memory_space<vmem>>, vector<32x16xbf16>
    %cst_14 = arith.constant dense<0.000000e+00> : vector<32x128xf32>
    %14 = tpu.matmul %13, %12, %cst_14 {dimension_numbers = #tpu.dot_dimension_numbers<[1], [0], [0], [1], [0, 0, 1, 1], [], []>} : vector<32x16xbf16>, vector<16x128xbf16>, vector<32x128xf32> -> vector<32x128xf32>
    %c0_15 = arith.constant 0 : index
    %c0_16 = arith.constant 0 : index
    %15 = vector.load %arg7[%c0_15, %c0_16] : memref<32x1xf32, #tpu.memory_space<vmem>>, vector<32x1xf32>
    %16 = vector.broadcast %15 : vector<32x1xf32> to vector<32x128xf32>
    %17 = arith.addf %14, %16 : vector<32x128xf32>
    %cst_17 = arith.constant 0.000000e+00 : f32
    %18 = vector.broadcast %cst_17 : f32 to vector<32x128xf32>
    %19 = arith.maximumf %17, %18 : vector<32x128xf32>
    %c1 = arith.constant 1 : index
    %c0_18 = arith.constant 0 : index
    %c0_19 = arith.constant 0 : index
    %20 = vector.load %arg1[%c1, %c0_18, %c0_19] : memref<8x7x128xbf16, #tpu.memory_space<vmem>>, vector<1x7x128xbf16>
    %21 = vector.shape_cast %20 : vector<1x7x128xbf16> to vector<7x128xbf16>
    %c0_20 = arith.constant 0 : index
    %c0_21 = arith.constant 0 : index
    %22 = vector.load %arg4[%c0_20, %c0_21] : memref<16x7xbf16, #tpu.memory_space<vmem>>, vector<16x7xbf16>
    %cst_22 = arith.constant dense<0.000000e+00> : vector<16x128xf32>
    %23 = tpu.matmul %22, %21, %cst_22 {dimension_numbers = #tpu.dot_dimension_numbers<[1], [0], [0], [1], [0, 0, 1, 1], [], []>} : vector<16x7xbf16>, vector<7x128xbf16>, vector<16x128xf32> -> vector<16x128xf32>
    %c0_23 = arith.constant 0 : index
    %c0_24 = arith.constant 0 : index
    %24 = vector.load %arg5[%c0_23, %c0_24] : memref<16x1xf32, #tpu.memory_space<vmem>>, vector<16x1xf32>
    %25 = vector.broadcast %24 : vector<16x1xf32> to vector<16x128xf32>
    %26 = arith.addf %23, %25 : vector<16x128xf32>
    %cst_25 = arith.constant 0.000000e+00 : f32
    %27 = vector.broadcast %cst_25 : f32 to vector<16x128xf32>
    %28 = arith.maximumf %26, %27 : vector<16x128xf32>
    %29 = arith.truncf %28 : vector<16x128xf32> to vector<16x128xbf16>
    %c0_26 = arith.constant 0 : index
    %c0_27 = arith.constant 0 : index
    %30 = vector.load %arg6[%c0_26, %c0_27] : memref<32x16xbf16, #tpu.memory_space<vmem>>, vector<32x16xbf16>
    %cst_28 = arith.constant dense<0.000000e+00> : vector<32x128xf32>
    %31 = tpu.matmul %30, %29, %cst_28 {dimension_numbers = #tpu.dot_dimension_numbers<[1], [0], [0], [1], [0, 0, 1, 1], [], []>} : vector<32x16xbf16>, vector<16x128xbf16>, vector<32x128xf32> -> vector<32x128xf32>
    %c0_29 = arith.constant 0 : index
    %c0_30 = arith.constant 0 : index
    %32 = vector.load %arg7[%c0_29, %c0_30] : memref<32x1xf32, #tpu.memory_space<vmem>>, vector<32x1xf32>
    %33 = vector.broadcast %32 : vector<32x1xf32> to vector<32x128xf32>
    %34 = arith.addf %31, %33 : vector<32x128xf32>
    %cst_31 = arith.constant 0.000000e+00 : f32
    %35 = vector.broadcast %cst_31 : f32 to vector<32x128xf32>
    %36 = arith.maximumf %34, %35 : vector<32x128xf32>
    %37 = arith.maximumf %19, %36 : vector<32x128xf32>
    %c2 = arith.constant 2 : index
    %c0_32 = arith.constant 0 : index
    %c0_33 = arith.constant 0 : index
    %38 = vector.load %arg1[%c2, %c0_32, %c0_33] : memref<8x7x128xbf16, #tpu.memory_space<vmem>>, vector<1x7x128xbf16>
    %39 = vector.shape_cast %38 : vector<1x7x128xbf16> to vector<7x128xbf16>
    %c0_34 = arith.constant 0 : index
    %c0_35 = arith.constant 0 : index
    %40 = vector.load %arg4[%c0_34, %c0_35] : memref<16x7xbf16, #tpu.memory_space<vmem>>, vector<16x7xbf16>
    %cst_36 = arith.constant dense<0.000000e+00> : vector<16x128xf32>
    %41 = tpu.matmul %40, %39, %cst_36 {dimension_numbers = #tpu.dot_dimension_numbers<[1], [0], [0], [1], [0, 0, 1, 1], [], []>} : vector<16x7xbf16>, vector<7x128xbf16>, vector<16x128xf32> -> vector<16x128xf32>
    %c0_37 = arith.constant 0 : index
    %c0_38 = arith.constant 0 : index
    %42 = vector.load %arg5[%c0_37, %c0_38] : memref<16x1xf32, #tpu.memory_space<vmem>>, vector<16x1xf32>
    %43 = vector.broadcast %42 : vector<16x1xf32> to vector<16x128xf32>
    %44 = arith.addf %41, %43 : vector<16x128xf32>
    %cst_39 = arith.constant 0.000000e+00 : f32
    %45 = vector.broadcast %cst_39 : f32 to vector<16x128xf32>
    %46 = arith.maximumf %44, %45 : vector<16x128xf32>
    %47 = arith.truncf %46 : vector<16x128xf32> to vector<16x128xbf16>
    %c0_40 = arith.constant 0 : index
    %c0_41 = arith.constant 0 : index
    %48 = vector.load %arg6[%c0_40, %c0_41] : memref<32x16xbf16, #tpu.memory_space<vmem>>, vector<32x16xbf16>
    %cst_42 = arith.constant dense<0.000000e+00> : vector<32x128xf32>
    %49 = tpu.matmul %48, %47, %cst_42 {dimension_numbers = #tpu.dot_dimension_numbers<[1], [0], [0], [1], [0, 0, 1, 1], [], []>} : vector<32x16xbf16>, vector<16x128xbf16>, vector<32x128xf32> -> vector<32x128xf32>
    %c0_43 = arith.constant 0 : index
    %c0_44 = arith.constant 0 : index
    %50 = vector.load %arg7[%c0_43, %c0_44] : memref<32x1xf32, #tpu.memory_space<vmem>>, vector<32x1xf32>
    %51 = vector.broadcast %50 : vector<32x1xf32> to vector<32x128xf32>
    %52 = arith.addf %49, %51 : vector<32x128xf32>
    %cst_45 = arith.constant 0.000000e+00 : f32
    %53 = vector.broadcast %cst_45 : f32 to vector<32x128xf32>
    %54 = arith.maximumf %52, %53 : vector<32x128xf32>
    %55 = arith.maximumf %37, %54 : vector<32x128xf32>
    %c3 = arith.constant 3 : index
    %c0_46 = arith.constant 0 : index
    %c0_47 = arith.constant 0 : index
    %56 = vector.load %arg1[%c3, %c0_46, %c0_47] : memref<8x7x128xbf16, #tpu.memory_space<vmem>>, vector<1x7x128xbf16>
    %57 = vector.shape_cast %56 : vector<1x7x128xbf16> to vector<7x128xbf16>
    %c0_48 = arith.constant 0 : index
    %c0_49 = arith.constant 0 : index
    %58 = vector.load %arg4[%c0_48, %c0_49] : memref<16x7xbf16, #tpu.memory_space<vmem>>, vector<16x7xbf16>
    %cst_50 = arith.constant dense<0.000000e+00> : vector<16x128xf32>
    %59 = tpu.matmul %58, %57, %cst_50 {dimension_numbers = #tpu.dot_dimension_numbers<[1], [0], [0], [1], [0, 0, 1, 1], [], []>} : vector<16x7xbf16>, vector<7x128xbf16>, vector<16x128xf32> -> vector<16x128xf32>
    %c0_51 = arith.constant 0 : index
    %c0_52 = arith.constant 0 : index
    %60 = vector.load %arg5[%c0_51, %c0_52] : memref<16x1xf32, #tpu.memory_space<vmem>>, vector<16x1xf32>
    %61 = vector.broadcast %60 : vector<16x1xf32> to vector<16x128xf32>
    %62 = arith.addf %59, %61 : vector<16x128xf32>
    %cst_53 = arith.constant 0.000000e+00 : f32
    %63 = vector.broadcast %cst_53 : f32 to vector<16x128xf32>
    %64 = arith.maximumf %62, %63 : vector<16x128xf32>
    %65 = arith.truncf %64 : vector<16x128xf32> to vector<16x128xbf16>
    %c0_54 = arith.constant 0 : index
    %c0_55 = arith.constant 0 : index
    %66 = vector.load %arg6[%c0_54, %c0_55] : memref<32x16xbf16, #tpu.memory_space<vmem>>, vector<32x16xbf16>
    %cst_56 = arith.constant dense<0.000000e+00> : vector<32x128xf32>
    %67 = tpu.matmul %66, %65, %cst_56 {dimension_numbers = #tpu.dot_dimension_numbers<[1], [0], [0], [1], [0, 0, 1, 1], [], []>} : vector<32x16xbf16>, vector<16x128xbf16>, vector<32x128xf32> -> vector<32x128xf32>
    %c0_57 = arith.constant 0 : index
    %c0_58 = arith.constant 0 : index
    %68 = vector.load %arg7[%c0_57, %c0_58] : memref<32x1xf32, #tpu.memory_space<vmem>>, vector<32x1xf32>
    %69 = vector.broadcast %68 : vector<32x1xf32> to vector<32x128xf32>
    %70 = arith.addf %67, %69 : vector<32x128xf32>
    %cst_59 = arith.constant 0.000000e+00 : f32
    %71 = vector.broadcast %cst_59 : f32 to vector<32x128xf32>
    %72 = arith.maximumf %70, %71 : vector<32x128xf32>
    %73 = arith.maximumf %55, %72 : vector<32x128xf32>
    %c4 = arith.constant 4 : index
    %c0_60 = arith.constant 0 : index
    %c0_61 = arith.constant 0 : index
    %74 = vector.load %arg1[%c4, %c0_60, %c0_61] : memref<8x7x128xbf16, #tpu.memory_space<vmem>>, vector<1x7x128xbf16>
    %75 = vector.shape_cast %74 : vector<1x7x128xbf16> to vector<7x128xbf16>
    %c0_62 = arith.constant 0 : index
    %c0_63 = arith.constant 0 : index
    %76 = vector.load %arg4[%c0_62, %c0_63] : memref<16x7xbf16, #tpu.memory_space<vmem>>, vector<16x7xbf16>
    %cst_64 = arith.constant dense<0.000000e+00> : vector<16x128xf32>
    %77 = tpu.matmul %76, %75, %cst_64 {dimension_numbers = #tpu.dot_dimension_numbers<[1], [0], [0], [1], [0, 0, 1, 1], [], []>} : vector<16x7xbf16>, vector<7x128xbf16>, vector<16x128xf32> -> vector<16x128xf32>
    %c0_65 = arith.constant 0 : index
    %c0_66 = arith.constant 0 : index
    %78 = vector.load %arg5[%c0_65, %c0_66] : memref<16x1xf32, #tpu.memory_space<vmem>>, vector<16x1xf32>
    %79 = vector.broadcast %78 : vector<16x1xf32> to vector<16x128xf32>
    %80 = arith.addf %77, %79 : vector<16x128xf32>
    %cst_67 = arith.constant 0.000000e+00 : f32
    %81 = vector.broadcast %cst_67 : f32 to vector<16x128xf32>
    %82 = arith.maximumf %80, %81 : vector<16x128xf32>
    %83 = arith.truncf %82 : vector<16x128xf32> to vector<16x128xbf16>
    %c0_68 = arith.constant 0 : index
    %c0_69 = arith.constant 0 : index
    %84 = vector.load %arg6[%c0_68, %c0_69] : memref<32x16xbf16, #tpu.memory_space<vmem>>, vector<32x16xbf16>
    %cst_70 = arith.constant dense<0.000000e+00> : vector<32x128xf32>
    %85 = tpu.matmul %84, %83, %cst_70 {dimension_numbers = #tpu.dot_dimension_numbers<[1], [0], [0], [1], [0, 0, 1, 1], [], []>} : vector<32x16xbf16>, vector<16x128xbf16>, vector<32x128xf32> -> vector<32x128xf32>
    %c0_71 = arith.constant 0 : index
    %c0_72 = arith.constant 0 : index
    %86 = vector.load %arg7[%c0_71, %c0_72] : memref<32x1xf32, #tpu.memory_space<vmem>>, vector<32x1xf32>
    %87 = vector.broadcast %86 : vector<32x1xf32> to vector<32x128xf32>
    %88 = arith.addf %85, %87 : vector<32x128xf32>
    %cst_73 = arith.constant 0.000000e+00 : f32
    %89 = vector.broadcast %cst_73 : f32 to vector<32x128xf32>
    %90 = arith.maximumf %88, %89 : vector<32x128xf32>
    %91 = arith.maximumf %73, %90 : vector<32x128xf32>
    %c5 = arith.constant 5 : index
    %c0_74 = arith.constant 0 : index
    %c0_75 = arith.constant 0 : index
    %92 = vector.load %arg1[%c5, %c0_74, %c0_75] : memref<8x7x128xbf16, #tpu.memory_space<vmem>>, vector<1x7x128xbf16>
    %93 = vector.shape_cast %92 : vector<1x7x128xbf16> to vector<7x128xbf16>
    %c0_76 = arith.constant 0 : index
    %c0_77 = arith.constant 0 : index
    %94 = vector.load %arg4[%c0_76, %c0_77] : memref<16x7xbf16, #tpu.memory_space<vmem>>, vector<16x7xbf16>
    %cst_78 = arith.constant dense<0.000000e+00> : vector<16x128xf32>
    %95 = tpu.matmul %94, %93, %cst_78 {dimension_numbers = #tpu.dot_dimension_numbers<[1], [0], [0], [1], [0, 0, 1, 1], [], []>} : vector<16x7xbf16>, vector<7x128xbf16>, vector<16x128xf32> -> vector<16x128xf32>
    %c0_79 = arith.constant 0 : index
    %c0_80 = arith.constant 0 : index
    %96 = vector.load %arg5[%c0_79, %c0_80] : memref<16x1xf32, #tpu.memory_space<vmem>>, vector<16x1xf32>
    %97 = vector.broadcast %96 : vector<16x1xf32> to vector<16x128xf32>
    %98 = arith.addf %95, %97 : vector<16x128xf32>
    %cst_81 = arith.constant 0.000000e+00 : f32
    %99 = vector.broadcast %cst_81 : f32 to vector<16x128xf32>
    %100 = arith.maximumf %98, %99 : vector<16x128xf32>
    %101 = arith.truncf %100 : vector<16x128xf32> to vector<16x128xbf16>
    %c0_82 = arith.constant 0 : index
    %c0_83 = arith.constant 0 : index
    %102 = vector.load %arg6[%c0_82, %c0_83] : memref<32x16xbf16, #tpu.memory_space<vmem>>, vector<32x16xbf16>
    %cst_84 = arith.constant dense<0.000000e+00> : vector<32x128xf32>
    %103 = tpu.matmul %102, %101, %cst_84 {dimension_numbers = #tpu.dot_dimension_numbers<[1], [0], [0], [1], [0, 0, 1, 1], [], []>} : vector<32x16xbf16>, vector<16x128xbf16>, vector<32x128xf32> -> vector<32x128xf32>
    %c0_85 = arith.constant 0 : index
    %c0_86 = arith.constant 0 : index
    %104 = vector.load %arg7[%c0_85, %c0_86] : memref<32x1xf32, #tpu.memory_space<vmem>>, vector<32x1xf32>
    %105 = vector.broadcast %104 : vector<32x1xf32> to vector<32x128xf32>
    %106 = arith.addf %103, %105 : vector<32x128xf32>
    %cst_87 = arith.constant 0.000000e+00 : f32
    %107 = vector.broadcast %cst_87 : f32 to vector<32x128xf32>
    %108 = arith.maximumf %106, %107 : vector<32x128xf32>
    %109 = arith.maximumf %91, %108 : vector<32x128xf32>
    %c6 = arith.constant 6 : index
    %c0_88 = arith.constant 0 : index
    %c0_89 = arith.constant 0 : index
    %110 = vector.load %arg1[%c6, %c0_88, %c0_89] : memref<8x7x128xbf16, #tpu.memory_space<vmem>>, vector<1x7x128xbf16>
    %111 = vector.shape_cast %110 : vector<1x7x128xbf16> to vector<7x128xbf16>
    %c0_90 = arith.constant 0 : index
    %c0_91 = arith.constant 0 : index
    %112 = vector.load %arg4[%c0_90, %c0_91] : memref<16x7xbf16, #tpu.memory_space<vmem>>, vector<16x7xbf16>
    %cst_92 = arith.constant dense<0.000000e+00> : vector<16x128xf32>
    %113 = tpu.matmul %112, %111, %cst_92 {dimension_numbers = #tpu.dot_dimension_numbers<[1], [0], [0], [1], [0, 0, 1, 1], [], []>} : vector<16x7xbf16>, vector<7x128xbf16>, vector<16x128xf32> -> vector<16x128xf32>
    %c0_93 = arith.constant 0 : index
    %c0_94 = arith.constant 0 : index
    %114 = vector.load %arg5[%c0_93, %c0_94] : memref<16x1xf32, #tpu.memory_space<vmem>>, vector<16x1xf32>
    %115 = vector.broadcast %114 : vector<16x1xf32> to vector<16x128xf32>
    %116 = arith.addf %113, %115 : vector<16x128xf32>
    %cst_95 = arith.constant 0.000000e+00 : f32
    %117 = vector.broadcast %cst_95 : f32 to vector<16x128xf32>
    %118 = arith.maximumf %116, %117 : vector<16x128xf32>
    %119 = arith.truncf %118 : vector<16x128xf32> to vector<16x128xbf16>
    %c0_96 = arith.constant 0 : index
    %c0_97 = arith.constant 0 : index
    %120 = vector.load %arg6[%c0_96, %c0_97] : memref<32x16xbf16, #tpu.memory_space<vmem>>, vector<32x16xbf16>
    %cst_98 = arith.constant dense<0.000000e+00> : vector<32x128xf32>
    %121 = tpu.matmul %120, %119, %cst_98 {dimension_numbers = #tpu.dot_dimension_numbers<[1], [0], [0], [1], [0, 0, 1, 1], [], []>} : vector<32x16xbf16>, vector<16x128xbf16>, vector<32x128xf32> -> vector<32x128xf32>
    %c0_99 = arith.constant 0 : index
    %c0_100 = arith.constant 0 : index
    %122 = vector.load %arg7[%c0_99, %c0_100] : memref<32x1xf32, #tpu.memory_space<vmem>>, vector<32x1xf32>
    %123 = vector.broadcast %122 : vector<32x1xf32> to vector<32x128xf32>
    %124 = arith.addf %121, %123 : vector<32x128xf32>
    %cst_101 = arith.constant 0.000000e+00 : f32
    %125 = vector.broadcast %cst_101 : f32 to vector<32x128xf32>
    %126 = arith.maximumf %124, %125 : vector<32x128xf32>
    %127 = arith.maximumf %109, %126 : vector<32x128xf32>
    %c7 = arith.constant 7 : index
    %c0_102 = arith.constant 0 : index
    %c0_103 = arith.constant 0 : index
    %128 = vector.load %arg1[%c7, %c0_102, %c0_103] : memref<8x7x128xbf16, #tpu.memory_space<vmem>>, vector<1x7x128xbf16>
    %129 = vector.shape_cast %128 : vector<1x7x128xbf16> to vector<7x128xbf16>
    %c0_104 = arith.constant 0 : index
    %c0_105 = arith.constant 0 : index
    %130 = vector.load %arg4[%c0_104, %c0_105] : memref<16x7xbf16, #tpu.memory_space<vmem>>, vector<16x7xbf16>
    %cst_106 = arith.constant dense<0.000000e+00> : vector<16x128xf32>
    %131 = tpu.matmul %130, %129, %cst_106 {dimension_numbers = #tpu.dot_dimension_numbers<[1], [0], [0], [1], [0, 0, 1, 1], [], []>} : vector<16x7xbf16>, vector<7x128xbf16>, vector<16x128xf32> -> vector<16x128xf32>
    %c0_107 = arith.constant 0 : index
    %c0_108 = arith.constant 0 : index
    %132 = vector.load %arg5[%c0_107, %c0_108] : memref<16x1xf32, #tpu.memory_space<vmem>>, vector<16x1xf32>
    %133 = vector.broadcast %132 : vector<16x1xf32> to vector<16x128xf32>
    %134 = arith.addf %131, %133 : vector<16x128xf32>
    %cst_109 = arith.constant 0.000000e+00 : f32
    %135 = vector.broadcast %cst_109 : f32 to vector<16x128xf32>
    %136 = arith.maximumf %134, %135 : vector<16x128xf32>
    %137 = arith.truncf %136 : vector<16x128xf32> to vector<16x128xbf16>
    %c0_110 = arith.constant 0 : index
    %c0_111 = arith.constant 0 : index
    %138 = vector.load %arg6[%c0_110, %c0_111] : memref<32x16xbf16, #tpu.memory_space<vmem>>, vector<32x16xbf16>
    %cst_112 = arith.constant dense<0.000000e+00> : vector<32x128xf32>
    %139 = tpu.matmul %138, %137, %cst_112 {dimension_numbers = #tpu.dot_dimension_numbers<[1], [0], [0], [1], [0, 0, 1, 1], [], []>} : vector<32x16xbf16>, vector<16x128xbf16>, vector<32x128xf32> -> vector<32x128xf32>
    %c0_113 = arith.constant 0 : index
    %c0_114 = arith.constant 0 : index
    %140 = vector.load %arg7[%c0_113, %c0_114] : memref<32x1xf32, #tpu.memory_space<vmem>>, vector<32x1xf32>
    %141 = vector.broadcast %140 : vector<32x1xf32> to vector<32x128xf32>
    %142 = arith.addf %139, %141 : vector<32x128xf32>
    %cst_115 = arith.constant 0.000000e+00 : f32
    %143 = vector.broadcast %cst_115 : f32 to vector<32x128xf32>
    %144 = arith.maximumf %142, %143 : vector<32x128xf32>
    %145 = arith.maximumf %127, %144 : vector<32x128xf32>
    %146 = arith.truncf %145 : vector<32x128xf32> to vector<32x128xbf16>
    %c0_116 = arith.constant 0 : index
    %c0_117 = arith.constant 0 : index
    %c0_118 = arith.constant 0 : index
    %147 = vector.load %arg2[%c0_116, %c0_117, %c0_118] : memref<16x7x128xbf16, #tpu.memory_space<vmem>>, vector<1x7x128xbf16>
    %148 = vector.shape_cast %147 : vector<1x7x128xbf16> to vector<7x128xbf16>
    %c0_119 = arith.constant 0 : index
    %c0_120 = arith.constant 0 : index
    %149 = vector.load %arg8[%c0_119, %c0_120] : memref<16x7xbf16, #tpu.memory_space<vmem>>, vector<16x7xbf16>
    %cst_121 = arith.constant dense<0.000000e+00> : vector<16x128xf32>
    %150 = tpu.matmul %149, %148, %cst_121 {dimension_numbers = #tpu.dot_dimension_numbers<[1], [0], [0], [1], [0, 0, 1, 1], [], []>} : vector<16x7xbf16>, vector<7x128xbf16>, vector<16x128xf32> -> vector<16x128xf32>
    %c0_122 = arith.constant 0 : index
    %c0_123 = arith.constant 0 : index
    %151 = vector.load %arg9[%c0_122, %c0_123] : memref<16x1xf32, #tpu.memory_space<vmem>>, vector<16x1xf32>
    %152 = vector.broadcast %151 : vector<16x1xf32> to vector<16x128xf32>
    %153 = arith.addf %150, %152 : vector<16x128xf32>
    %cst_124 = arith.constant 0.000000e+00 : f32
    %154 = vector.broadcast %cst_124 : f32 to vector<16x128xf32>
    %155 = arith.maximumf %153, %154 : vector<16x128xf32>
    %156 = arith.truncf %155 : vector<16x128xf32> to vector<16x128xbf16>
    %c0_125 = arith.constant 0 : index
    %c0_126 = arith.constant 0 : index
    %157 = vector.load %arg10[%c0_125, %c0_126] : memref<32x16xbf16, #tpu.memory_space<vmem>>, vector<32x16xbf16>
    %cst_127 = arith.constant dense<0.000000e+00> : vector<32x128xf32>
    %158 = tpu.matmul %157, %156, %cst_127 {dimension_numbers = #tpu.dot_dimension_numbers<[1], [0], [0], [1], [0, 0, 1, 1], [], []>} : vector<32x16xbf16>, vector<16x128xbf16>, vector<32x128xf32> -> vector<32x128xf32>
    %c0_128 = arith.constant 0 : index
    %c0_129 = arith.constant 0 : index
    %159 = vector.load %arg11[%c0_128, %c0_129] : memref<32x1xf32, #tpu.memory_space<vmem>>, vector<32x1xf32>
    %160 = vector.broadcast %159 : vector<32x1xf32> to vector<32x128xf32>
    %161 = arith.addf %158, %160 : vector<32x128xf32>
    %cst_130 = arith.constant 0.000000e+00 : f32
    %162 = vector.broadcast %cst_130 : f32 to vector<32x128xf32>
    %163 = arith.maximumf %161, %162 : vector<32x128xf32>
    %c1_131 = arith.constant 1 : index
    %c0_132 = arith.constant 0 : index
    %c0_133 = arith.constant 0 : index
    %164 = vector.load %arg2[%c1_131, %c0_132, %c0_133] : memref<16x7x128xbf16, #tpu.memory_space<vmem>>, vector<1x7x128xbf16>
    %165 = vector.shape_cast %164 : vector<1x7x128xbf16> to vector<7x128xbf16>
    %c0_134 = arith.constant 0 : index
    %c0_135 = arith.constant 0 : index
    %166 = vector.load %arg8[%c0_134, %c0_135] : memref<16x7xbf16, #tpu.memory_space<vmem>>, vector<16x7xbf16>
    %cst_136 = arith.constant dense<0.000000e+00> : vector<16x128xf32>
    %167 = tpu.matmul %166, %165, %cst_136 {dimension_numbers = #tpu.dot_dimension_numbers<[1], [0], [0], [1], [0, 0, 1, 1], [], []>} : vector<16x7xbf16>, vector<7x128xbf16>, vector<16x128xf32> -> vector<16x128xf32>
    %c0_137 = arith.constant 0 : index
    %c0_138 = arith.constant 0 : index
    %168 = vector.load %arg9[%c0_137, %c0_138] : memref<16x1xf32, #tpu.memory_space<vmem>>, vector<16x1xf32>
    %169 = vector.broadcast %168 : vector<16x1xf32> to vector<16x128xf32>
    %170 = arith.addf %167, %169 : vector<16x128xf32>
    %cst_139 = arith.constant 0.000000e+00 : f32
    %171 = vector.broadcast %cst_139 : f32 to vector<16x128xf32>
    %172 = arith.maximumf %170, %171 : vector<16x128xf32>
    %173 = arith.truncf %172 : vector<16x128xf32> to vector<16x128xbf16>
    %c0_140 = arith.constant 0 : index
    %c0_141 = arith.constant 0 : index
    %174 = vector.load %arg10[%c0_140, %c0_141] : memref<32x16xbf16, #tpu.memory_space<vmem>>, vector<32x16xbf16>
    %cst_142 = arith.constant dense<0.000000e+00> : vector<32x128xf32>
    %175 = tpu.matmul %174, %173, %cst_142 {dimension_numbers = #tpu.dot_dimension_numbers<[1], [0], [0], [1], [0, 0, 1, 1], [], []>} : vector<32x16xbf16>, vector<16x128xbf16>, vector<32x128xf32> -> vector<32x128xf32>
    %c0_143 = arith.constant 0 : index
    %c0_144 = arith.constant 0 : index
    %176 = vector.load %arg11[%c0_143, %c0_144] : memref<32x1xf32, #tpu.memory_space<vmem>>, vector<32x1xf32>
    %177 = vector.broadcast %176 : vector<32x1xf32> to vector<32x128xf32>
    %178 = arith.addf %175, %177 : vector<32x128xf32>
    %cst_145 = arith.constant 0.000000e+00 : f32
    %179 = vector.broadcast %cst_145 : f32 to vector<32x128xf32>
    %180 = arith.maximumf %178, %179 : vector<32x128xf32>
    %181 = arith.maximumf %163, %180 : vector<32x128xf32>
    %c2_146 = arith.constant 2 : index
    %c0_147 = arith.constant 0 : index
    %c0_148 = arith.constant 0 : index
    %182 = vector.load %arg2[%c2_146, %c0_147, %c0_148] : memref<16x7x128xbf16, #tpu.memory_space<vmem>>, vector<1x7x128xbf16>
    %183 = vector.shape_cast %182 : vector<1x7x128xbf16> to vector<7x128xbf16>
    %c0_149 = arith.constant 0 : index
    %c0_150 = arith.constant 0 : index
    %184 = vector.load %arg8[%c0_149, %c0_150] : memref<16x7xbf16, #tpu.memory_space<vmem>>, vector<16x7xbf16>
    %cst_151 = arith.constant dense<0.000000e+00> : vector<16x128xf32>
    %185 = tpu.matmul %184, %183, %cst_151 {dimension_numbers = #tpu.dot_dimension_numbers<[1], [0], [0], [1], [0, 0, 1, 1], [], []>} : vector<16x7xbf16>, vector<7x128xbf16>, vector<16x128xf32> -> vector<16x128xf32>
    %c0_152 = arith.constant 0 : index
    %c0_153 = arith.constant 0 : index
    %186 = vector.load %arg9[%c0_152, %c0_153] : memref<16x1xf32, #tpu.memory_space<vmem>>, vector<16x1xf32>
    %187 = vector.broadcast %186 : vector<16x1xf32> to vector<16x128xf32>
    %188 = arith.addf %185, %187 : vector<16x128xf32>
    %cst_154 = arith.constant 0.000000e+00 : f32
    %189 = vector.broadcast %cst_154 : f32 to vector<16x128xf32>
    %190 = arith.maximumf %188, %189 : vector<16x128xf32>
    %191 = arith.truncf %190 : vector<16x128xf32> to vector<16x128xbf16>
    %c0_155 = arith.constant 0 : index
    %c0_156 = arith.constant 0 : index
    %192 = vector.load %arg10[%c0_155, %c0_156] : memref<32x16xbf16, #tpu.memory_space<vmem>>, vector<32x16xbf16>
    %cst_157 = arith.constant dense<0.000000e+00> : vector<32x128xf32>
    %193 = tpu.matmul %192, %191, %cst_157 {dimension_numbers = #tpu.dot_dimension_numbers<[1], [0], [0], [1], [0, 0, 1, 1], [], []>} : vector<32x16xbf16>, vector<16x128xbf16>, vector<32x128xf32> -> vector<32x128xf32>
    %c0_158 = arith.constant 0 : index
    %c0_159 = arith.constant 0 : index
    %194 = vector.load %arg11[%c0_158, %c0_159] : memref<32x1xf32, #tpu.memory_space<vmem>>, vector<32x1xf32>
    %195 = vector.broadcast %194 : vector<32x1xf32> to vector<32x128xf32>
    %196 = arith.addf %193, %195 : vector<32x128xf32>
    %cst_160 = arith.constant 0.000000e+00 : f32
    %197 = vector.broadcast %cst_160 : f32 to vector<32x128xf32>
    %198 = arith.maximumf %196, %197 : vector<32x128xf32>
    %199 = arith.maximumf %181, %198 : vector<32x128xf32>
    %c3_161 = arith.constant 3 : index
    %c0_162 = arith.constant 0 : index
    %c0_163 = arith.constant 0 : index
    %200 = vector.load %arg2[%c3_161, %c0_162, %c0_163] : memref<16x7x128xbf16, #tpu.memory_space<vmem>>, vector<1x7x128xbf16>
    %201 = vector.shape_cast %200 : vector<1x7x128xbf16> to vector<7x128xbf16>
    %c0_164 = arith.constant 0 : index
    %c0_165 = arith.constant 0 : index
    %202 = vector.load %arg8[%c0_164, %c0_165] : memref<16x7xbf16, #tpu.memory_space<vmem>>, vector<16x7xbf16>
    %cst_166 = arith.constant dense<0.000000e+00> : vector<16x128xf32>
    %203 = tpu.matmul %202, %201, %cst_166 {dimension_numbers = #tpu.dot_dimension_numbers<[1], [0], [0], [1], [0, 0, 1, 1], [], []>} : vector<16x7xbf16>, vector<7x128xbf16>, vector<16x128xf32> -> vector<16x128xf32>
    %c0_167 = arith.constant 0 : index
    %c0_168 = arith.constant 0 : index
    %204 = vector.load %arg9[%c0_167, %c0_168] : memref<16x1xf32, #tpu.memory_space<vmem>>, vector<16x1xf32>
    %205 = vector.broadcast %204 : vector<16x1xf32> to vector<16x128xf32>
    %206 = arith.addf %203, %205 : vector<16x128xf32>
    %cst_169 = arith.constant 0.000000e+00 : f32
    %207 = vector.broadcast %cst_169 : f32 to vector<16x128xf32>
    %208 = arith.maximumf %206, %207 : vector<16x128xf32>
    %209 = arith.truncf %208 : vector<16x128xf32> to vector<16x128xbf16>
    %c0_170 = arith.constant 0 : index
    %c0_171 = arith.constant 0 : index
    %210 = vector.load %arg10[%c0_170, %c0_171] : memref<32x16xbf16, #tpu.memory_space<vmem>>, vector<32x16xbf16>
    %cst_172 = arith.constant dense<0.000000e+00> : vector<32x128xf32>
    %211 = tpu.matmul %210, %209, %cst_172 {dimension_numbers = #tpu.dot_dimension_numbers<[1], [0], [0], [1], [0, 0, 1, 1], [], []>} : vector<32x16xbf16>, vector<16x128xbf16>, vector<32x128xf32> -> vector<32x128xf32>
    %c0_173 = arith.constant 0 : index
    %c0_174 = arith.constant 0 : index
    %212 = vector.load %arg11[%c0_173, %c0_174] : memref<32x1xf32, #tpu.memory_space<vmem>>, vector<32x1xf32>
    %213 = vector.broadcast %212 : vector<32x1xf32> to vector<32x128xf32>
    %214 = arith.addf %211, %213 : vector<32x128xf32>
    %cst_175 = arith.constant 0.000000e+00 : f32
    %215 = vector.broadcast %cst_175 : f32 to vector<32x128xf32>
    %216 = arith.maximumf %214, %215 : vector<32x128xf32>
    %217 = arith.maximumf %199, %216 : vector<32x128xf32>
    %c4_176 = arith.constant 4 : index
    %c0_177 = arith.constant 0 : index
    %c0_178 = arith.constant 0 : index
    %218 = vector.load %arg2[%c4_176, %c0_177, %c0_178] : memref<16x7x128xbf16, #tpu.memory_space<vmem>>, vector<1x7x128xbf16>
    %219 = vector.shape_cast %218 : vector<1x7x128xbf16> to vector<7x128xbf16>
    %c0_179 = arith.constant 0 : index
    %c0_180 = arith.constant 0 : index
    %220 = vector.load %arg8[%c0_179, %c0_180] : memref<16x7xbf16, #tpu.memory_space<vmem>>, vector<16x7xbf16>
    %cst_181 = arith.constant dense<0.000000e+00> : vector<16x128xf32>
    %221 = tpu.matmul %220, %219, %cst_181 {dimension_numbers = #tpu.dot_dimension_numbers<[1], [0], [0], [1], [0, 0, 1, 1], [], []>} : vector<16x7xbf16>, vector<7x128xbf16>, vector<16x128xf32> -> vector<16x128xf32>
    %c0_182 = arith.constant 0 : index
    %c0_183 = arith.constant 0 : index
    %222 = vector.load %arg9[%c0_182, %c0_183] : memref<16x1xf32, #tpu.memory_space<vmem>>, vector<16x1xf32>
    %223 = vector.broadcast %222 : vector<16x1xf32> to vector<16x128xf32>
    %224 = arith.addf %221, %223 : vector<16x128xf32>
    %cst_184 = arith.constant 0.000000e+00 : f32
    %225 = vector.broadcast %cst_184 : f32 to vector<16x128xf32>
    %226 = arith.maximumf %224, %225 : vector<16x128xf32>
    %227 = arith.truncf %226 : vector<16x128xf32> to vector<16x128xbf16>
    %c0_185 = arith.constant 0 : index
    %c0_186 = arith.constant 0 : index
    %228 = vector.load %arg10[%c0_185, %c0_186] : memref<32x16xbf16, #tpu.memory_space<vmem>>, vector<32x16xbf16>
    %cst_187 = arith.constant dense<0.000000e+00> : vector<32x128xf32>
    %229 = tpu.matmul %228, %227, %cst_187 {dimension_numbers = #tpu.dot_dimension_numbers<[1], [0], [0], [1], [0, 0, 1, 1], [], []>} : vector<32x16xbf16>, vector<16x128xbf16>, vector<32x128xf32> -> vector<32x128xf32>
    %c0_188 = arith.constant 0 : index
    %c0_189 = arith.constant 0 : index
    %230 = vector.load %arg11[%c0_188, %c0_189] : memref<32x1xf32, #tpu.memory_space<vmem>>, vector<32x1xf32>
    %231 = vector.broadcast %230 : vector<32x1xf32> to vector<32x128xf32>
    %232 = arith.addf %229, %231 : vector<32x128xf32>
    %cst_190 = arith.constant 0.000000e+00 : f32
    %233 = vector.broadcast %cst_190 : f32 to vector<32x128xf32>
    %234 = arith.maximumf %232, %233 : vector<32x128xf32>
    %235 = arith.maximumf %217, %234 : vector<32x128xf32>
    %c5_191 = arith.constant 5 : index
    %c0_192 = arith.constant 0 : index
    %c0_193 = arith.constant 0 : index
    %236 = vector.load %arg2[%c5_191, %c0_192, %c0_193] : memref<16x7x128xbf16, #tpu.memory_space<vmem>>, vector<1x7x128xbf16>
    %237 = vector.shape_cast %236 : vector<1x7x128xbf16> to vector<7x128xbf16>
    %c0_194 = arith.constant 0 : index
    %c0_195 = arith.constant 0 : index
    %238 = vector.load %arg8[%c0_194, %c0_195] : memref<16x7xbf16, #tpu.memory_space<vmem>>, vector<16x7xbf16>
    %cst_196 = arith.constant dense<0.000000e+00> : vector<16x128xf32>
    %239 = tpu.matmul %238, %237, %cst_196 {dimension_numbers = #tpu.dot_dimension_numbers<[1], [0], [0], [1], [0, 0, 1, 1], [], []>} : vector<16x7xbf16>, vector<7x128xbf16>, vector<16x128xf32> -> vector<16x128xf32>
    %c0_197 = arith.constant 0 : index
    %c0_198 = arith.constant 0 : index
    %240 = vector.load %arg9[%c0_197, %c0_198] : memref<16x1xf32, #tpu.memory_space<vmem>>, vector<16x1xf32>
    %241 = vector.broadcast %240 : vector<16x1xf32> to vector<16x128xf32>
    %242 = arith.addf %239, %241 : vector<16x128xf32>
    %cst_199 = arith.constant 0.000000e+00 : f32
    %243 = vector.broadcast %cst_199 : f32 to vector<16x128xf32>
    %244 = arith.maximumf %242, %243 : vector<16x128xf32>
    %245 = arith.truncf %244 : vector<16x128xf32> to vector<16x128xbf16>
    %c0_200 = arith.constant 0 : index
    %c0_201 = arith.constant 0 : index
    %246 = vector.load %arg10[%c0_200, %c0_201] : memref<32x16xbf16, #tpu.memory_space<vmem>>, vector<32x16xbf16>
    %cst_202 = arith.constant dense<0.000000e+00> : vector<32x128xf32>
    %247 = tpu.matmul %246, %245, %cst_202 {dimension_numbers = #tpu.dot_dimension_numbers<[1], [0], [0], [1], [0, 0, 1, 1], [], []>} : vector<32x16xbf16>, vector<16x128xbf16>, vector<32x128xf32> -> vector<32x128xf32>
    %c0_203 = arith.constant 0 : index
    %c0_204 = arith.constant 0 : index
    %248 = vector.load %arg11[%c0_203, %c0_204] : memref<32x1xf32, #tpu.memory_space<vmem>>, vector<32x1xf32>
    %249 = vector.broadcast %248 : vector<32x1xf32> to vector<32x128xf32>
    %250 = arith.addf %247, %249 : vector<32x128xf32>
    %cst_205 = arith.constant 0.000000e+00 : f32
    %251 = vector.broadcast %cst_205 : f32 to vector<32x128xf32>
    %252 = arith.maximumf %250, %251 : vector<32x128xf32>
    %253 = arith.maximumf %235, %252 : vector<32x128xf32>
    %c6_206 = arith.constant 6 : index
    %c0_207 = arith.constant 0 : index
    %c0_208 = arith.constant 0 : index
    %254 = vector.load %arg2[%c6_206, %c0_207, %c0_208] : memref<16x7x128xbf16, #tpu.memory_space<vmem>>, vector<1x7x128xbf16>
    %255 = vector.shape_cast %254 : vector<1x7x128xbf16> to vector<7x128xbf16>
    %c0_209 = arith.constant 0 : index
    %c0_210 = arith.constant 0 : index
    %256 = vector.load %arg8[%c0_209, %c0_210] : memref<16x7xbf16, #tpu.memory_space<vmem>>, vector<16x7xbf16>
    %cst_211 = arith.constant dense<0.000000e+00> : vector<16x128xf32>
    %257 = tpu.matmul %256, %255, %cst_211 {dimension_numbers = #tpu.dot_dimension_numbers<[1], [0], [0], [1], [0, 0, 1, 1], [], []>} : vector<16x7xbf16>, vector<7x128xbf16>, vector<16x128xf32> -> vector<16x128xf32>
    %c0_212 = arith.constant 0 : index
    %c0_213 = arith.constant 0 : index
    %258 = vector.load %arg9[%c0_212, %c0_213] : memref<16x1xf32, #tpu.memory_space<vmem>>, vector<16x1xf32>
    %259 = vector.broadcast %258 : vector<16x1xf32> to vector<16x128xf32>
    %260 = arith.addf %257, %259 : vector<16x128xf32>
    %cst_214 = arith.constant 0.000000e+00 : f32
    %261 = vector.broadcast %cst_214 : f32 to vector<16x128xf32>
    %262 = arith.maximumf %260, %261 : vector<16x128xf32>
    %263 = arith.truncf %262 : vector<16x128xf32> to vector<16x128xbf16>
    %c0_215 = arith.constant 0 : index
    %c0_216 = arith.constant 0 : index
    %264 = vector.load %arg10[%c0_215, %c0_216] : memref<32x16xbf16, #tpu.memory_space<vmem>>, vector<32x16xbf16>
    %cst_217 = arith.constant dense<0.000000e+00> : vector<32x128xf32>
    %265 = tpu.matmul %264, %263, %cst_217 {dimension_numbers = #tpu.dot_dimension_numbers<[1], [0], [0], [1], [0, 0, 1, 1], [], []>} : vector<32x16xbf16>, vector<16x128xbf16>, vector<32x128xf32> -> vector<32x128xf32>
    %c0_218 = arith.constant 0 : index
    %c0_219 = arith.constant 0 : index
    %266 = vector.load %arg11[%c0_218, %c0_219] : memref<32x1xf32, #tpu.memory_space<vmem>>, vector<32x1xf32>
    %267 = vector.broadcast %266 : vector<32x1xf32> to vector<32x128xf32>
    %268 = arith.addf %265, %267 : vector<32x128xf32>
    %cst_220 = arith.constant 0.000000e+00 : f32
    %269 = vector.broadcast %cst_220 : f32 to vector<32x128xf32>
    %270 = arith.maximumf %268, %269 : vector<32x128xf32>
    %271 = arith.maximumf %253, %270 : vector<32x128xf32>
    %c7_221 = arith.constant 7 : index
    %c0_222 = arith.constant 0 : index
    %c0_223 = arith.constant 0 : index
    %272 = vector.load %arg2[%c7_221, %c0_222, %c0_223] : memref<16x7x128xbf16, #tpu.memory_space<vmem>>, vector<1x7x128xbf16>
    %273 = vector.shape_cast %272 : vector<1x7x128xbf16> to vector<7x128xbf16>
    %c0_224 = arith.constant 0 : index
    %c0_225 = arith.constant 0 : index
    %274 = vector.load %arg8[%c0_224, %c0_225] : memref<16x7xbf16, #tpu.memory_space<vmem>>, vector<16x7xbf16>
    %cst_226 = arith.constant dense<0.000000e+00> : vector<16x128xf32>
    %275 = tpu.matmul %274, %273, %cst_226 {dimension_numbers = #tpu.dot_dimension_numbers<[1], [0], [0], [1], [0, 0, 1, 1], [], []>} : vector<16x7xbf16>, vector<7x128xbf16>, vector<16x128xf32> -> vector<16x128xf32>
    %c0_227 = arith.constant 0 : index
    %c0_228 = arith.constant 0 : index
    %276 = vector.load %arg9[%c0_227, %c0_228] : memref<16x1xf32, #tpu.memory_space<vmem>>, vector<16x1xf32>
    %277 = vector.broadcast %276 : vector<16x1xf32> to vector<16x128xf32>
    %278 = arith.addf %275, %277 : vector<16x128xf32>
    %cst_229 = arith.constant 0.000000e+00 : f32
    %279 = vector.broadcast %cst_229 : f32 to vector<16x128xf32>
    %280 = arith.maximumf %278, %279 : vector<16x128xf32>
    %281 = arith.truncf %280 : vector<16x128xf32> to vector<16x128xbf16>
    %c0_230 = arith.constant 0 : index
    %c0_231 = arith.constant 0 : index
    %282 = vector.load %arg10[%c0_230, %c0_231] : memref<32x16xbf16, #tpu.memory_space<vmem>>, vector<32x16xbf16>
    %cst_232 = arith.constant dense<0.000000e+00> : vector<32x128xf32>
    %283 = tpu.matmul %282, %281, %cst_232 {dimension_numbers = #tpu.dot_dimension_numbers<[1], [0], [0], [1], [0, 0, 1, 1], [], []>} : vector<32x16xbf16>, vector<16x128xbf16>, vector<32x128xf32> -> vector<32x128xf32>
    %c0_233 = arith.constant 0 : index
    %c0_234 = arith.constant 0 : index
    %284 = vector.load %arg11[%c0_233, %c0_234] : memref<32x1xf32, #tpu.memory_space<vmem>>, vector<32x1xf32>
    %285 = vector.broadcast %284 : vector<32x1xf32> to vector<32x128xf32>
    %286 = arith.addf %283, %285 : vector<32x128xf32>
    %cst_235 = arith.constant 0.000000e+00 : f32
    %287 = vector.broadcast %cst_235 : f32 to vector<32x128xf32>
    %288 = arith.maximumf %286, %287 : vector<32x128xf32>
    %289 = arith.maximumf %271, %288 : vector<32x128xf32>
    %c8 = arith.constant 8 : index
    %c0_236 = arith.constant 0 : index
    %c0_237 = arith.constant 0 : index
    %290 = vector.load %arg2[%c8, %c0_236, %c0_237] : memref<16x7x128xbf16, #tpu.memory_space<vmem>>, vector<1x7x128xbf16>
    %291 = vector.shape_cast %290 : vector<1x7x128xbf16> to vector<7x128xbf16>
    %c0_238 = arith.constant 0 : index
    %c0_239 = arith.constant 0 : index
    %292 = vector.load %arg8[%c0_238, %c0_239] : memref<16x7xbf16, #tpu.memory_space<vmem>>, vector<16x7xbf16>
    %cst_240 = arith.constant dense<0.000000e+00> : vector<16x128xf32>
    %293 = tpu.matmul %292, %291, %cst_240 {dimension_numbers = #tpu.dot_dimension_numbers<[1], [0], [0], [1], [0, 0, 1, 1], [], []>} : vector<16x7xbf16>, vector<7x128xbf16>, vector<16x128xf32> -> vector<16x128xf32>
    %c0_241 = arith.constant 0 : index
    %c0_242 = arith.constant 0 : index
    %294 = vector.load %arg9[%c0_241, %c0_242] : memref<16x1xf32, #tpu.memory_space<vmem>>, vector<16x1xf32>
    %295 = vector.broadcast %294 : vector<16x1xf32> to vector<16x128xf32>
    %296 = arith.addf %293, %295 : vector<16x128xf32>
    %cst_243 = arith.constant 0.000000e+00 : f32
    %297 = vector.broadcast %cst_243 : f32 to vector<16x128xf32>
    %298 = arith.maximumf %296, %297 : vector<16x128xf32>
    %299 = arith.truncf %298 : vector<16x128xf32> to vector<16x128xbf16>
    %c0_244 = arith.constant 0 : index
    %c0_245 = arith.constant 0 : index
    %300 = vector.load %arg10[%c0_244, %c0_245] : memref<32x16xbf16, #tpu.memory_space<vmem>>, vector<32x16xbf16>
    %cst_246 = arith.constant dense<0.000000e+00> : vector<32x128xf32>
    %301 = tpu.matmul %300, %299, %cst_246 {dimension_numbers = #tpu.dot_dimension_numbers<[1], [0], [0], [1], [0, 0, 1, 1], [], []>} : vector<32x16xbf16>, vector<16x128xbf16>, vector<32x128xf32> -> vector<32x128xf32>
    %c0_247 = arith.constant 0 : index
    %c0_248 = arith.constant 0 : index
    %302 = vector.load %arg11[%c0_247, %c0_248] : memref<32x1xf32, #tpu.memory_space<vmem>>, vector<32x1xf32>
    %303 = vector.broadcast %302 : vector<32x1xf32> to vector<32x128xf32>
    %304 = arith.addf %301, %303 : vector<32x128xf32>
    %cst_249 = arith.constant 0.000000e+00 : f32
    %305 = vector.broadcast %cst_249 : f32 to vector<32x128xf32>
    %306 = arith.maximumf %304, %305 : vector<32x128xf32>
    %307 = arith.maximumf %289, %306 : vector<32x128xf32>
    %c9 = arith.constant 9 : index
    %c0_250 = arith.constant 0 : index
    %c0_251 = arith.constant 0 : index
    %308 = vector.load %arg2[%c9, %c0_250, %c0_251] : memref<16x7x128xbf16, #tpu.memory_space<vmem>>, vector<1x7x128xbf16>
    %309 = vector.shape_cast %308 : vector<1x7x128xbf16> to vector<7x128xbf16>
    %c0_252 = arith.constant 0 : index
    %c0_253 = arith.constant 0 : index
    %310 = vector.load %arg8[%c0_252, %c0_253] : memref<16x7xbf16, #tpu.memory_space<vmem>>, vector<16x7xbf16>
    %cst_254 = arith.constant dense<0.000000e+00> : vector<16x128xf32>
    %311 = tpu.matmul %310, %309, %cst_254 {dimension_numbers = #tpu.dot_dimension_numbers<[1], [0], [0], [1], [0, 0, 1, 1], [], []>} : vector<16x7xbf16>, vector<7x128xbf16>, vector<16x128xf32> -> vector<16x128xf32>
    %c0_255 = arith.constant 0 : index
    %c0_256 = arith.constant 0 : index
    %312 = vector.load %arg9[%c0_255, %c0_256] : memref<16x1xf32, #tpu.memory_space<vmem>>, vector<16x1xf32>
    %313 = vector.broadcast %312 : vector<16x1xf32> to vector<16x128xf32>
    %314 = arith.addf %311, %313 : vector<16x128xf32>
    %cst_257 = arith.constant 0.000000e+00 : f32
    %315 = vector.broadcast %cst_257 : f32 to vector<16x128xf32>
    %316 = arith.maximumf %314, %315 : vector<16x128xf32>
    %317 = arith.truncf %316 : vector<16x128xf32> to vector<16x128xbf16>
    %c0_258 = arith.constant 0 : index
    %c0_259 = arith.constant 0 : index
    %318 = vector.load %arg10[%c0_258, %c0_259] : memref<32x16xbf16, #tpu.memory_space<vmem>>, vector<32x16xbf16>
    %cst_260 = arith.constant dense<0.000000e+00> : vector<32x128xf32>
    %319 = tpu.matmul %318, %317, %cst_260 {dimension_numbers = #tpu.dot_dimension_numbers<[1], [0], [0], [1], [0, 0, 1, 1], [], []>} : vector<32x16xbf16>, vector<16x128xbf16>, vector<32x128xf32> -> vector<32x128xf32>
    %c0_261 = arith.constant 0 : index
    %c0_262 = arith.constant 0 : index
    %320 = vector.load %arg11[%c0_261, %c0_262] : memref<32x1xf32, #tpu.memory_space<vmem>>, vector<32x1xf32>
    %321 = vector.broadcast %320 : vector<32x1xf32> to vector<32x128xf32>
    %322 = arith.addf %319, %321 : vector<32x128xf32>
    %cst_263 = arith.constant 0.000000e+00 : f32
    %323 = vector.broadcast %cst_263 : f32 to vector<32x128xf32>
    %324 = arith.maximumf %322, %323 : vector<32x128xf32>
    %325 = arith.maximumf %307, %324 : vector<32x128xf32>
    %c10 = arith.constant 10 : index
    %c0_264 = arith.constant 0 : index
    %c0_265 = arith.constant 0 : index
    %326 = vector.load %arg2[%c10, %c0_264, %c0_265] : memref<16x7x128xbf16, #tpu.memory_space<vmem>>, vector<1x7x128xbf16>
    %327 = vector.shape_cast %326 : vector<1x7x128xbf16> to vector<7x128xbf16>
    %c0_266 = arith.constant 0 : index
    %c0_267 = arith.constant 0 : index
    %328 = vector.load %arg8[%c0_266, %c0_267] : memref<16x7xbf16, #tpu.memory_space<vmem>>, vector<16x7xbf16>
    %cst_268 = arith.constant dense<0.000000e+00> : vector<16x128xf32>
    %329 = tpu.matmul %328, %327, %cst_268 {dimension_numbers = #tpu.dot_dimension_numbers<[1], [0], [0], [1], [0, 0, 1, 1], [], []>} : vector<16x7xbf16>, vector<7x128xbf16>, vector<16x128xf32> -> vector<16x128xf32>
    %c0_269 = arith.constant 0 : index
    %c0_270 = arith.constant 0 : index
    %330 = vector.load %arg9[%c0_269, %c0_270] : memref<16x1xf32, #tpu.memory_space<vmem>>, vector<16x1xf32>
    %331 = vector.broadcast %330 : vector<16x1xf32> to vector<16x128xf32>
    %332 = arith.addf %329, %331 : vector<16x128xf32>
    %cst_271 = arith.constant 0.000000e+00 : f32
    %333 = vector.broadcast %cst_271 : f32 to vector<16x128xf32>
    %334 = arith.maximumf %332, %333 : vector<16x128xf32>
    %335 = arith.truncf %334 : vector<16x128xf32> to vector<16x128xbf16>
    %c0_272 = arith.constant 0 : index
    %c0_273 = arith.constant 0 : index
    %336 = vector.load %arg10[%c0_272, %c0_273] : memref<32x16xbf16, #tpu.memory_space<vmem>>, vector<32x16xbf16>
    %cst_274 = arith.constant dense<0.000000e+00> : vector<32x128xf32>
    %337 = tpu.matmul %336, %335, %cst_274 {dimension_numbers = #tpu.dot_dimension_numbers<[1], [0], [0], [1], [0, 0, 1, 1], [], []>} : vector<32x16xbf16>, vector<16x128xbf16>, vector<32x128xf32> -> vector<32x128xf32>
    %c0_275 = arith.constant 0 : index
    %c0_276 = arith.constant 0 : index
    %338 = vector.load %arg11[%c0_275, %c0_276] : memref<32x1xf32, #tpu.memory_space<vmem>>, vector<32x1xf32>
    %339 = vector.broadcast %338 : vector<32x1xf32> to vector<32x128xf32>
    %340 = arith.addf %337, %339 : vector<32x128xf32>
    %cst_277 = arith.constant 0.000000e+00 : f32
    %341 = vector.broadcast %cst_277 : f32 to vector<32x128xf32>
    %342 = arith.maximumf %340, %341 : vector<32x128xf32>
    %343 = arith.maximumf %325, %342 : vector<32x128xf32>
    %c11 = arith.constant 11 : index
    %c0_278 = arith.constant 0 : index
    %c0_279 = arith.constant 0 : index
    %344 = vector.load %arg2[%c11, %c0_278, %c0_279] : memref<16x7x128xbf16, #tpu.memory_space<vmem>>, vector<1x7x128xbf16>
    %345 = vector.shape_cast %344 : vector<1x7x128xbf16> to vector<7x128xbf16>
    %c0_280 = arith.constant 0 : index
    %c0_281 = arith.constant 0 : index
    %346 = vector.load %arg8[%c0_280, %c0_281] : memref<16x7xbf16, #tpu.memory_space<vmem>>, vector<16x7xbf16>
    %cst_282 = arith.constant dense<0.000000e+00> : vector<16x128xf32>
    %347 = tpu.matmul %346, %345, %cst_282 {dimension_numbers = #tpu.dot_dimension_numbers<[1], [0], [0], [1], [0, 0, 1, 1], [], []>} : vector<16x7xbf16>, vector<7x128xbf16>, vector<16x128xf32> -> vector<16x128xf32>
    %c0_283 = arith.constant 0 : index
    %c0_284 = arith.constant 0 : index
    %348 = vector.load %arg9[%c0_283, %c0_284] : memref<16x1xf32, #tpu.memory_space<vmem>>, vector<16x1xf32>
    %349 = vector.broadcast %348 : vector<16x1xf32> to vector<16x128xf32>
    %350 = arith.addf %347, %349 : vector<16x128xf32>
    %cst_285 = arith.constant 0.000000e+00 : f32
    %351 = vector.broadcast %cst_285 : f32 to vector<16x128xf32>
    %352 = arith.maximumf %350, %351 : vector<16x128xf32>
    %353 = arith.truncf %352 : vector<16x128xf32> to vector<16x128xbf16>
    %c0_286 = arith.constant 0 : index
    %c0_287 = arith.constant 0 : index
    %354 = vector.load %arg10[%c0_286, %c0_287] : memref<32x16xbf16, #tpu.memory_space<vmem>>, vector<32x16xbf16>
    %cst_288 = arith.constant dense<0.000000e+00> : vector<32x128xf32>
    %355 = tpu.matmul %354, %353, %cst_288 {dimension_numbers = #tpu.dot_dimension_numbers<[1], [0], [0], [1], [0, 0, 1, 1], [], []>} : vector<32x16xbf16>, vector<16x128xbf16>, vector<32x128xf32> -> vector<32x128xf32>
    %c0_289 = arith.constant 0 : index
    %c0_290 = arith.constant 0 : index
    %356 = vector.load %arg11[%c0_289, %c0_290] : memref<32x1xf32, #tpu.memory_space<vmem>>, vector<32x1xf32>
    %357 = vector.broadcast %356 : vector<32x1xf32> to vector<32x128xf32>
    %358 = arith.addf %355, %357 : vector<32x128xf32>
    %cst_291 = arith.constant 0.000000e+00 : f32
    %359 = vector.broadcast %cst_291 : f32 to vector<32x128xf32>
    %360 = arith.maximumf %358, %359 : vector<32x128xf32>
    %361 = arith.maximumf %343, %360 : vector<32x128xf32>
    %c12 = arith.constant 12 : index
    %c0_292 = arith.constant 0 : index
    %c0_293 = arith.constant 0 : index
    %362 = vector.load %arg2[%c12, %c0_292, %c0_293] : memref<16x7x128xbf16, #tpu.memory_space<vmem>>, vector<1x7x128xbf16>
    %363 = vector.shape_cast %362 : vector<1x7x128xbf16> to vector<7x128xbf16>
    %c0_294 = arith.constant 0 : index
    %c0_295 = arith.constant 0 : index
    %364 = vector.load %arg8[%c0_294, %c0_295] : memref<16x7xbf16, #tpu.memory_space<vmem>>, vector<16x7xbf16>
    %cst_296 = arith.constant dense<0.000000e+00> : vector<16x128xf32>
    %365 = tpu.matmul %364, %363, %cst_296 {dimension_numbers = #tpu.dot_dimension_numbers<[1], [0], [0], [1], [0, 0, 1, 1], [], []>} : vector<16x7xbf16>, vector<7x128xbf16>, vector<16x128xf32> -> vector<16x128xf32>
    %c0_297 = arith.constant 0 : index
    %c0_298 = arith.constant 0 : index
    %366 = vector.load %arg9[%c0_297, %c0_298] : memref<16x1xf32, #tpu.memory_space<vmem>>, vector<16x1xf32>
    %367 = vector.broadcast %366 : vector<16x1xf32> to vector<16x128xf32>
    %368 = arith.addf %365, %367 : vector<16x128xf32>
    %cst_299 = arith.constant 0.000000e+00 : f32
    %369 = vector.broadcast %cst_299 : f32 to vector<16x128xf32>
    %370 = arith.maximumf %368, %369 : vector<16x128xf32>
    %371 = arith.truncf %370 : vector<16x128xf32> to vector<16x128xbf16>
    %c0_300 = arith.constant 0 : index
    %c0_301 = arith.constant 0 : index
    %372 = vector.load %arg10[%c0_300, %c0_301] : memref<32x16xbf16, #tpu.memory_space<vmem>>, vector<32x16xbf16>
    %cst_302 = arith.constant dense<0.000000e+00> : vector<32x128xf32>
    %373 = tpu.matmul %372, %371, %cst_302 {dimension_numbers = #tpu.dot_dimension_numbers<[1], [0], [0], [1], [0, 0, 1, 1], [], []>} : vector<32x16xbf16>, vector<16x128xbf16>, vector<32x128xf32> -> vector<32x128xf32>
    %c0_303 = arith.constant 0 : index
    %c0_304 = arith.constant 0 : index
    %374 = vector.load %arg11[%c0_303, %c0_304] : memref<32x1xf32, #tpu.memory_space<vmem>>, vector<32x1xf32>
    %375 = vector.broadcast %374 : vector<32x1xf32> to vector<32x128xf32>
    %376 = arith.addf %373, %375 : vector<32x128xf32>
    %cst_305 = arith.constant 0.000000e+00 : f32
    %377 = vector.broadcast %cst_305 : f32 to vector<32x128xf32>
    %378 = arith.maximumf %376, %377 : vector<32x128xf32>
    %379 = arith.maximumf %361, %378 : vector<32x128xf32>
    %c13 = arith.constant 13 : index
    %c0_306 = arith.constant 0 : index
    %c0_307 = arith.constant 0 : index
    %380 = vector.load %arg2[%c13, %c0_306, %c0_307] : memref<16x7x128xbf16, #tpu.memory_space<vmem>>, vector<1x7x128xbf16>
    %381 = vector.shape_cast %380 : vector<1x7x128xbf16> to vector<7x128xbf16>
    %c0_308 = arith.constant 0 : index
    %c0_309 = arith.constant 0 : index
    %382 = vector.load %arg8[%c0_308, %c0_309] : memref<16x7xbf16, #tpu.memory_space<vmem>>, vector<16x7xbf16>
    %cst_310 = arith.constant dense<0.000000e+00> : vector<16x128xf32>
    %383 = tpu.matmul %382, %381, %cst_310 {dimension_numbers = #tpu.dot_dimension_numbers<[1], [0], [0], [1], [0, 0, 1, 1], [], []>} : vector<16x7xbf16>, vector<7x128xbf16>, vector<16x128xf32> -> vector<16x128xf32>
    %c0_311 = arith.constant 0 : index
    %c0_312 = arith.constant 0 : index
    %384 = vector.load %arg9[%c0_311, %c0_312] : memref<16x1xf32, #tpu.memory_space<vmem>>, vector<16x1xf32>
    %385 = vector.broadcast %384 : vector<16x1xf32> to vector<16x128xf32>
    %386 = arith.addf %383, %385 : vector<16x128xf32>
    %cst_313 = arith.constant 0.000000e+00 : f32
    %387 = vector.broadcast %cst_313 : f32 to vector<16x128xf32>
    %388 = arith.maximumf %386, %387 : vector<16x128xf32>
    %389 = arith.truncf %388 : vector<16x128xf32> to vector<16x128xbf16>
    %c0_314 = arith.constant 0 : index
    %c0_315 = arith.constant 0 : index
    %390 = vector.load %arg10[%c0_314, %c0_315] : memref<32x16xbf16, #tpu.memory_space<vmem>>, vector<32x16xbf16>
    %cst_316 = arith.constant dense<0.000000e+00> : vector<32x128xf32>
    %391 = tpu.matmul %390, %389, %cst_316 {dimension_numbers = #tpu.dot_dimension_numbers<[1], [0], [0], [1], [0, 0, 1, 1], [], []>} : vector<32x16xbf16>, vector<16x128xbf16>, vector<32x128xf32> -> vector<32x128xf32>
    %c0_317 = arith.constant 0 : index
    %c0_318 = arith.constant 0 : index
    %392 = vector.load %arg11[%c0_317, %c0_318] : memref<32x1xf32, #tpu.memory_space<vmem>>, vector<32x1xf32>
    %393 = vector.broadcast %392 : vector<32x1xf32> to vector<32x128xf32>
    %394 = arith.addf %391, %393 : vector<32x128xf32>
    %cst_319 = arith.constant 0.000000e+00 : f32
    %395 = vector.broadcast %cst_319 : f32 to vector<32x128xf32>
    %396 = arith.maximumf %394, %395 : vector<32x128xf32>
    %397 = arith.maximumf %379, %396 : vector<32x128xf32>
    %c14 = arith.constant 14 : index
    %c0_320 = arith.constant 0 : index
    %c0_321 = arith.constant 0 : index
    %398 = vector.load %arg2[%c14, %c0_320, %c0_321] : memref<16x7x128xbf16, #tpu.memory_space<vmem>>, vector<1x7x128xbf16>
    %399 = vector.shape_cast %398 : vector<1x7x128xbf16> to vector<7x128xbf16>
    %c0_322 = arith.constant 0 : index
    %c0_323 = arith.constant 0 : index
    %400 = vector.load %arg8[%c0_322, %c0_323] : memref<16x7xbf16, #tpu.memory_space<vmem>>, vector<16x7xbf16>
    %cst_324 = arith.constant dense<0.000000e+00> : vector<16x128xf32>
    %401 = tpu.matmul %400, %399, %cst_324 {dimension_numbers = #tpu.dot_dimension_numbers<[1], [0], [0], [1], [0, 0, 1, 1], [], []>} : vector<16x7xbf16>, vector<7x128xbf16>, vector<16x128xf32> -> vector<16x128xf32>
    %c0_325 = arith.constant 0 : index
    %c0_326 = arith.constant 0 : index
    %402 = vector.load %arg9[%c0_325, %c0_326] : memref<16x1xf32, #tpu.memory_space<vmem>>, vector<16x1xf32>
    %403 = vector.broadcast %402 : vector<16x1xf32> to vector<16x128xf32>
    %404 = arith.addf %401, %403 : vector<16x128xf32>
    %cst_327 = arith.constant 0.000000e+00 : f32
    %405 = vector.broadcast %cst_327 : f32 to vector<16x128xf32>
    %406 = arith.maximumf %404, %405 : vector<16x128xf32>
    %407 = arith.truncf %406 : vector<16x128xf32> to vector<16x128xbf16>
    %c0_328 = arith.constant 0 : index
    %c0_329 = arith.constant 0 : index
    %408 = vector.load %arg10[%c0_328, %c0_329] : memref<32x16xbf16, #tpu.memory_space<vmem>>, vector<32x16xbf16>
    %cst_330 = arith.constant dense<0.000000e+00> : vector<32x128xf32>
    %409 = tpu.matmul %408, %407, %cst_330 {dimension_numbers = #tpu.dot_dimension_numbers<[1], [0], [0], [1], [0, 0, 1, 1], [], []>} : vector<32x16xbf16>, vector<16x128xbf16>, vector<32x128xf32> -> vector<32x128xf32>
    %c0_331 = arith.constant 0 : index
    %c0_332 = arith.constant 0 : index
    %410 = vector.load %arg11[%c0_331, %c0_332] : memref<32x1xf32, #tpu.memory_space<vmem>>, vector<32x1xf32>
    %411 = vector.broadcast %410 : vector<32x1xf32> to vector<32x128xf32>
    %412 = arith.addf %409, %411 : vector<32x128xf32>
    %cst_333 = arith.constant 0.000000e+00 : f32
    %413 = vector.broadcast %cst_333 : f32 to vector<32x128xf32>
    %414 = arith.maximumf %412, %413 : vector<32x128xf32>
    %415 = arith.maximumf %397, %414 : vector<32x128xf32>
    %c15 = arith.constant 15 : index
    %c0_334 = arith.constant 0 : index
    %c0_335 = arith.constant 0 : index
    %416 = vector.load %arg2[%c15, %c0_334, %c0_335] : memref<16x7x128xbf16, #tpu.memory_space<vmem>>, vector<1x7x128xbf16>
    %417 = vector.shape_cast %416 : vector<1x7x128xbf16> to vector<7x128xbf16>
    %c0_336 = arith.constant 0 : index
    %c0_337 = arith.constant 0 : index
    %418 = vector.load %arg8[%c0_336, %c0_337] : memref<16x7xbf16, #tpu.memory_space<vmem>>, vector<16x7xbf16>
    %cst_338 = arith.constant dense<0.000000e+00> : vector<16x128xf32>
    %419 = tpu.matmul %418, %417, %cst_338 {dimension_numbers = #tpu.dot_dimension_numbers<[1], [0], [0], [1], [0, 0, 1, 1], [], []>} : vector<16x7xbf16>, vector<7x128xbf16>, vector<16x128xf32> -> vector<16x128xf32>
    %c0_339 = arith.constant 0 : index
    %c0_340 = arith.constant 0 : index
    %420 = vector.load %arg9[%c0_339, %c0_340] : memref<16x1xf32, #tpu.memory_space<vmem>>, vector<16x1xf32>
    %421 = vector.broadcast %420 : vector<16x1xf32> to vector<16x128xf32>
    %422 = arith.addf %419, %421 : vector<16x128xf32>
    %cst_341 = arith.constant 0.000000e+00 : f32
    %423 = vector.broadcast %cst_341 : f32 to vector<16x128xf32>
    %424 = arith.maximumf %422, %423 : vector<16x128xf32>
    %425 = arith.truncf %424 : vector<16x128xf32> to vector<16x128xbf16>
    %c0_342 = arith.constant 0 : index
    %c0_343 = arith.constant 0 : index
    %426 = vector.load %arg10[%c0_342, %c0_343] : memref<32x16xbf16, #tpu.memory_space<vmem>>, vector<32x16xbf16>
    %cst_344 = arith.constant dense<0.000000e+00> : vector<32x128xf32>
    %427 = tpu.matmul %426, %425, %cst_344 {dimension_numbers = #tpu.dot_dimension_numbers<[1], [0], [0], [1], [0, 0, 1, 1], [], []>} : vector<32x16xbf16>, vector<16x128xbf16>, vector<32x128xf32> -> vector<32x128xf32>
    %c0_345 = arith.constant 0 : index
    %c0_346 = arith.constant 0 : index
    %428 = vector.load %arg11[%c0_345, %c0_346] : memref<32x1xf32, #tpu.memory_space<vmem>>, vector<32x1xf32>
    %429 = vector.broadcast %428 : vector<32x1xf32> to vector<32x128xf32>
    %430 = arith.addf %427, %429 : vector<32x128xf32>
    %cst_347 = arith.constant 0.000000e+00 : f32
    %431 = vector.broadcast %cst_347 : f32 to vector<32x128xf32>
    %432 = arith.maximumf %430, %431 : vector<32x128xf32>
    %433 = arith.maximumf %415, %432 : vector<32x128xf32>
    %434 = arith.truncf %433 : vector<32x128xf32> to vector<32x128xbf16>
    %435 = tpu.concatenate %146, %434 in 1 : vector<32x128xbf16>, vector<32x128xbf16> -> vector<32x256xbf16>
    %436 = tpu.concatenate %2, %2 in 1 : vector<32x128xf32>, vector<32x128xf32> -> vector<32x256xf32>
    %c0_348 = arith.constant 0 : index
    %c0_349 = arith.constant 0 : index
    %437 = vector.load %arg12[%c0_348, %c0_349] : memref<32x32xbf16, #tpu.memory_space<vmem>>, vector<32x32xbf16>
    %cst_350 = arith.constant dense<0.000000e+00> : vector<32x256xf32>
    %438 = tpu.matmul %437, %435, %cst_350 {dimension_numbers = #tpu.dot_dimension_numbers<[1], [0], [0], [1], [0, 0, 1, 1], [], []>} : vector<32x32xbf16>, vector<32x256xbf16>, vector<32x256xf32> -> vector<32x256xf32>
    %439 = arith.addf %438, %436 : vector<32x256xf32>
    %c0_351 = arith.constant 0 : index
    %c0_352 = arith.constant 0 : index
    %440 = vector.load %arg14[%c0_351, %c0_352] : memref<32x1xf32, #tpu.memory_space<vmem>>, vector<32x1xf32>
    %441 = vector.broadcast %440 : vector<32x1xf32> to vector<32x256xf32>
    %442 = arith.addf %439, %441 : vector<32x256xf32>
    %cst_353 = arith.constant 0.000000e+00 : f32
    %443 = vector.broadcast %cst_353 : f32 to vector<32x256xf32>
    %444 = arith.maximumf %442, %443 : vector<32x256xf32>
    %445 = vector.extract_strided_slice %444 {offsets = [0, 0], sizes = [32, 128], strides = [1, 1]} : vector<32x256xf32> to vector<32x128xf32>
    %c0_354 = arith.constant 0 : index
    %c0_355 = arith.constant 0 : index
    %446 = vector.load %arg15[%c0_354, %c0_355] : memref<64x128xf32, #tpu.memory_space<vmem>>, vector<32x128xf32>
    tpu.vector_store %arg15[%c0_354, %c0_355], %445 {strides = array<i32>} : memref<64x128xf32, #tpu.memory_space<vmem>>, vector<32x128xf32>,
    %447 = vector.extract_strided_slice %444 {offsets = [0, 128], sizes = [32, 128], strides = [1, 1]} : vector<32x256xf32> to vector<32x128xf32>
    %c32 = arith.constant 32 : index
    %c0_356 = arith.constant 0 : index
    %448 = vector.load %arg15[%c32, %c0_356] : memref<64x128xf32, #tpu.memory_space<vmem>>, vector<32x128xf32>
    tpu.vector_store %arg15[%c32, %c0_356], %447 {strides = array<i32>} : memref<64x128xf32, #tpu.memory_space<vmem>>, vector<32x128xf32>,
    return
  }
  func.func @transform_0(%arg0: i32) -> (i32, i32, i32) {
    %c0_i32 = arith.constant 0 : i32
    %c0_i32_0 = arith.constant 0 : i32
    %c0_i32_1 = arith.constant 0 : i32
    return %c0_i32, %c0_i32_0, %arg0 : i32, i32, i32
  }
  func.func @transform_1(%arg0: i32) -> (i32, i32, i32) {
    %c0_i32 = arith.constant 0 : i32
    %c0_i32_0 = arith.constant 0 : i32
    %c0_i32_1 = arith.constant 0 : i32
    return %c0_i32, %c0_i32_0, %arg0 : i32, i32, i32
  }
  func.func @transform_2(%arg0: i32) -> (i32, i32) {
    %c0_i32 = arith.constant 0 : i32
    %c0_i32_0 = arith.constant 0 : i32
    return %c0_i32, %arg0 : i32, i32
  }
  func.func @transform_3(%arg0: i32) -> (i32, i32) {
    %c0_i32 = arith.constant 0 : i32
    %c0_i32_0 = arith.constant 0 : i32
    %c0_i32_1 = arith.constant 0 : i32
    return %c0_i32, %c0_i32_0 : i32, i32
  }
  func.func @transform_4(%arg0: i32) -> (i32, i32) {
    %c0_i32 = arith.constant 0 : i32
    %c0_i32_0 = arith.constant 0 : i32
    %c0_i32_1 = arith.constant 0 : i32
    return %c0_i32, %c0_i32_0 : i32, i32
  }
  func.func @transform_5(%arg0: i32) -> (i32, i32) {
    %c0_i32 = arith.constant 0 : i32
    %c0_i32_0 = arith.constant 0 : i32
    %c0_i32_1 = arith.constant 0 : i32
    return %c0_i32, %c0_i32_0 : i32, i32
  }
  func.func @transform_6(%arg0: i32) -> (i32, i32) {
    %c0_i32 = arith.constant 0 : i32
    %c0_i32_0 = arith.constant 0 : i32
    %c0_i32_1 = arith.constant 0 : i32
    return %c0_i32, %c0_i32_0 : i32, i32
  }
  func.func @transform_7(%arg0: i32) -> (i32, i32) {
    %c0_i32 = arith.constant 0 : i32
    %c0_i32_0 = arith.constant 0 : i32
    %c0_i32_1 = arith.constant 0 : i32
    return %c0_i32, %c0_i32_0 : i32, i32
  }
  func.func @transform_8(%arg0: i32) -> (i32, i32) {
    %c0_i32 = arith.constant 0 : i32
    %c0_i32_0 = arith.constant 0 : i32
    %c0_i32_1 = arith.constant 0 : i32
    return %c0_i32, %c0_i32_0 : i32, i32
  }
  func.func @transform_9(%arg0: i32) -> (i32, i32) {
    %c0_i32 = arith.constant 0 : i32
    %c0_i32_0 = arith.constant 0 : i32
    %c0_i32_1 = arith.constant 0 : i32
    return %c0_i32, %c0_i32_0 : i32, i32
  }
  func.func @transform_10(%arg0: i32) -> (i32, i32) {
    %c0_i32 = arith.constant 0 : i32
    %c0_i32_0 = arith.constant 0 : i32
    %c0_i32_1 = arith.constant 0 : i32
    return %c0_i32, %c0_i32_0 : i32, i32
  }
  func.func @transform_11(%arg0: i32) -> (i32, i32) {
    %c0_i32 = arith.constant 0 : i32
    %c0_i32_0 = arith.constant 0 : i32
    %c0_i32_1 = arith.constant 0 : i32
    return %c0_i32, %c0_i32_0 : i32, i32
  }
  func.func @transform_12(%arg0: i32) -> (i32, i32) {
    %c0_i32 = arith.constant 0 : i32
    %c0_i32_0 = arith.constant 0 : i32
    %c0_i32_1 = arith.constant 0 : i32
    return %c0_i32, %c0_i32_0 : i32, i32
  }
  func.func @transform_13(%arg0: i32) -> (i32, i32) {
    %c0_i32 = arith.constant 0 : i32
    %c0_i32_0 = arith.constant 0 : i32
    %c0_i32_1 = arith.constant 0 : i32
    return %c0_i32, %c0_i32_0 : i32, i32
  }
  func.func @transform_14(%arg0: i32) -> (i32, i32) {
    %c0_i32 = arith.constant 0 : i32
    %c0_i32_0 = arith.constant 0 : i32
    return %c0_i32, %arg0 : i32, i32
  }
}

</mosaic_0001>

<llo_original>
// kernel: tpu_custom_call.1
$region0: #{tpu_custom_call.1}
  #allocation0 [shape = 'u32[]', space=smem, size = 0x4, offset = 0x4, fixed_abs, tag = 'smem constant byte address 0x4 - core index']
  #allocation1 [shape = 'u32[72,128]{1,0:T(1,128)}', space=vmem, size = 0x9000, scoped, tag = 'internal scratch']
  %s0 = inlined_call_operand.vmem [shape: bf16[8,7,128], index: 0, kind: input, shape index: {}]
  %s1 = inlined_call_operand.vmem [shape: bf16[16,7,128], index: 1, kind: input, shape index: {}]
  %s2 = inlined_call_operand.vmem [shape: bf16[6,128], index: 2, kind: input, shape index: {}]
  %s3 = inlined_call_operand.vmem [shape: bf16[16,7], index: 3, kind: input, shape index: {}]
  %s4 = inlined_call_operand.vmem [shape: f32[16,1], index: 4, kind: input, shape index: {}]
  %s5 = inlined_call_operand.vmem [shape: bf16[32,16], index: 5, kind: input, shape index: {}]
  %s6 = inlined_call_operand.vmem [shape: f32[32,1], index: 6, kind: input, shape index: {}]
  %s7 = inlined_call_operand.vmem [shape: bf16[16,7], index: 7, kind: input, shape index: {}]
  %s8 = inlined_call_operand.vmem [shape: f32[16,1], index: 8, kind: input, shape index: {}]
  %s9 = inlined_call_operand.vmem [shape: bf16[32,16], index: 9, kind: input, shape index: {}]
  %s10 = inlined_call_operand.vmem [shape: f32[32,1], index: 10, kind: input, shape index: {}]
  %s11 = inlined_call_operand.vmem [shape: bf16[32,32], index: 11, kind: input, shape index: {}]
  %s12 = inlined_call_operand.vmem [shape: bf16[32,6], index: 12, kind: input, shape index: {}]
  %s13 = inlined_call_operand.vmem [shape: f32[32,1], index: 13, kind: input, shape index: {}]
  %s14 = inlined_call_operand.hbm [shape: f32[64,128], index: 14, kind: output, shape index: {}]
  %s15 = sld [smem:[#allocation0]]
  $region66: #{tpu_custom_call.1} parent=0
    _
  %s17 = ssub.s32 1, %s15
  %s18 = scalar_select 0, %s17, %s15
  $region1: #{tpu_custom_call.1} parent=0
    #allocation2 [shape = 'u8[32768]{0}', space=vmem, size = 0x8000, scoped, tag = 'output window, operand 0, single buffered']
    #allocation3 [shape = 's32[1]{0}', space=sflag, size = 0x4, scoped, tag = 'scoped memory for tpu_custom_call.1']
    %19 = vsyncpa [#allocation3], 0
    // Predicated region
    $region2: #{tpu_custom_call.1} parent=1 // pred_check
      _
    $region3: #{tpu_custom_call.1} parent=1 // pred_check_branch
      %21 = sbr.rel (0) target = $region5
    $region4: #{tpu_custom_call.1} parent=1 // pred_region
      _
    $region5: #{tpu_custom_call.1} parent=1 // pred_fallthru
      _
    // Predicated region
    $region6: #{tpu_custom_call.1} parent=1 // pred_check
      _
    $region7: #{tpu_custom_call.1} parent=1 // pred_check_branch
      %23 = sbr.rel (0) target = $region9
    $region8: #{tpu_custom_call.1} parent=1 // pred_region
      _
    $region9: #{tpu_custom_call.1} parent=1 // pred_fallthru
      _
    // Predicated region
    $region10: #{tpu_custom_call.1} parent=1 // pred_check
      _
    $region11: #{tpu_custom_call.1} parent=1 // pred_check_branch
      %25 = sbr.rel (0) target = $region13
    $region12: #{tpu_custom_call.1} parent=1 // pred_region
      _
    $region13: #{tpu_custom_call.1} parent=1 // pred_fallthru
      _
    // Predicated region
    $region14: #{tpu_custom_call.1} parent=1 // pred_check
      _
    $region15: #{tpu_custom_call.1} parent=1 // pred_check_branch
      %27 = sbr.rel (0) target = $region17
    $region16: #{tpu_custom_call.1} parent=1 // pred_region
      _
    $region17: #{tpu_custom_call.1} parent=1 // pred_fallthru
      _
    // Predicated region
    $region18: #{tpu_custom_call.1} parent=1 // pred_check
      _
    $region19: #{tpu_custom_call.1} parent=1 // pred_check_branch
      %29 = sbr.rel (0) target = $region21
    $region20: #{tpu_custom_call.1} parent=1 // pred_region
      _
    $region21: #{tpu_custom_call.1} parent=1 // pred_fallthru
      _
    // Predicated region
    $region22: #{tpu_custom_call.1} parent=1 // pred_check
      _
    $region23: #{tpu_custom_call.1} parent=1 // pred_check_branch
      %31 = sbr.rel (0) target = $region25
    $region24: #{tpu_custom_call.1} parent=1 // pred_region
      _
    $region25: #{tpu_custom_call.1} parent=1 // pred_fallthru
      _
    // Predicated region
    $region26: #{tpu_custom_call.1} parent=1 // pred_check
      _
    $region27: #{tpu_custom_call.1} parent=1 // pred_check_branch
      %33 = sbr.rel (0) target = $region29
    $region28: #{tpu_custom_call.1} parent=1 // pred_region
      _
    $region29: #{tpu_custom_call.1} parent=1 // pred_fallthru
      _
    // Predicated region
    $region30: #{tpu_custom_call.1} parent=1 // pred_check
      _
    $region31: #{tpu_custom_call.1} parent=1 // pred_check_branch
      %35 = sbr.rel (0) target = $region33
    $region32: #{tpu_custom_call.1} parent=1 // pred_region
      _
    $region33: #{tpu_custom_call.1} parent=1 // pred_fallthru
      _
    // Predicated region
    $region34: #{tpu_custom_call.1} parent=1 // pred_check
      _
    $region35: #{tpu_custom_call.1} parent=1 // pred_check_branch
      %37 = sbr.rel (0) target = $region37
    $region36: #{tpu_custom_call.1} parent=1 // pred_region
      _
    $region37: #{tpu_custom_call.1} parent=1 // pred_fallthru
      _
    // Predicated region
    $region38: #{tpu_custom_call.1} parent=1 // pred_check
      _
    $region39: #{tpu_custom_call.1} parent=1 // pred_check_branch
      %39 = sbr.rel (0) target = $region41
    $region40: #{tpu_custom_call.1} parent=1 // pred_region
      _
    $region41: #{tpu_custom_call.1} parent=1 // pred_fallthru
      _
    // Predicated region
    $region42: #{tpu_custom_call.1} parent=1 // pred_check
      _
    $region43: #{tpu_custom_call.1} parent=1 // pred_check_branch
      %41 = sbr.rel (0) target = $region45
    $region44: #{tpu_custom_call.1} parent=1 // pred_region
      _
    $region45: #{tpu_custom_call.1} parent=1 // pred_fallthru
      _
    // Predicated region
    $region46: #{tpu_custom_call.1} parent=1 // pred_check
      _
    $region47: #{tpu_custom_call.1} parent=1 // pred_check_branch
      %43 = sbr.rel (0) target = $region49
    $region48: #{tpu_custom_call.1} parent=1 // pred_region
      _
    $region49: #{tpu_custom_call.1} parent=1 // pred_fallthru
      _
    // Predicated region
    $region50: #{tpu_custom_call.1} parent=1 // pred_check
      _
    $region51: #{tpu_custom_call.1} parent=1 // pred_check_branch
      %45 = sbr.rel (0) target = $region53
    $region52: #{tpu_custom_call.1} parent=1 // pred_region
      _
    $region53: #{tpu_custom_call.1} parent=1 // pred_fallthru
      _
    // Predicated region
    $region54: #{tpu_custom_call.1} parent=1 // pred_check
      _
    $region55: #{tpu_custom_call.1} parent=1 // pred_check_branch
      %47 = sbr.rel (0) target = $region57
    $region56: #{tpu_custom_call.1} parent=1 // pred_region
      _
    $region57: #{tpu_custom_call.1} parent=1 // pred_fallthru
      _
    %v49 = vld [vmem:[%s12] sm:$0xf]
    %v50 = vld [vmem:[%s12 + $0x4] sm:$0xf]
    %v51 = vld [vmem:[%s12 + $0x8] sm:$0xf]
    %v52 = vld [vmem:[%s12 + $0xc] sm:$0xf]
    %v53 = vld [vmem:[%s2] sm:$0x7]
    %v58 = vunpack.c.l.b16 %v49
    %v59 = vunpack.c.l.b16 %v50
    %v60 = vunpack.c.l.b16 %v51
    %v61 = vunpack.c.l.b16 %v52
    %v62 = vpack.c.b16 %v59, %v58
    %v63 = vpack.c.b16 %v61, %v60
    %vm64 = vcmask 48128
    %v66 = vsel %vm64, %v62, 0
    %v69 = vsel %vm64, %v63, 0
    %vm71 = vcmask 1042432
    %v73 = vsel %vm71, %v53, 0
    %75 = vmatpush.bf16.msra.mxu0 0
    %76 = vmatpush.bf16.msra.mxu0 0
    %77 = vmatpush.bf16.msra.mxu0 0
    %78 = vmatpush.bf16.msra.mxu0 0
    %79 = vmatpush.bf16.msra.mxu0 0
    %80 = vmatpush.bf16.msra.mxu0 0
    %81 = vmatpush.bf16.msra.mxu0 0
    %82 = vmatpush.bf16.msra.mxu0 %v73
    %83 = vmatmul.bf16.gmra.mxu0 %v66
    %v84 = vpop.f32.mrf.mxu0
    %v85 = vadd.f32 0.0, %v84
    %v86 = vpop.f32.mrf.mxu0
    %v87 = vadd.f32 0.0, %v86
    %88 = vmatmul.bf16.gmra.mxu0 %v69
    %v89 = vpop.f32.mrf.mxu0
    %v90 = vadd.f32 0.0, %v89
    %v91 = vpop.f32.mrf.mxu0
    %v92 = vadd.f32 0.0, %v91
    %93 = vdwg.mxu0
    %v94 = vld [vmem:[%s0] sm:$0xf]
    %v95 = vld [vmem:[%s3] sm:$0xf]
    %v96 = vld [vmem:[%s3 + $0x4] sm:$0xf]
    %v97 = vld [vmem:[%s4] sm:$0xff]
    %v98 = vld [vmem:[%s4 + $0x8] sm:$0xff]
    %100 = vset.pattern.permute.xlu0 0
    %101 = vperm.xlu0 %100, %v97
    %v102 = vpop.permute.xlu0 %101
    %105 = vset.pattern.permute.xlu0 0
    %106 = vperm.xlu0 %105, %v98
    %v107 = vpop.permute.xlu0 %106
    %v111 = vunpack.c.l.b16 %v95
    %v112 = vunpack.c.l.b16 %v96
    %v113 = vpack.c.b16 %v112, %v111
    %vm114 = vcmask 56320
    %v116 = vsel %vm114, %v113, 0
    %vm118 = vcmask 1043456
    %v119 = vsel %vm71, 4294967295, 65535
    %v120 = vsel %vm118, %v119, 0
    %v122 = vand.u32 %v94, %v120
    %124 = vmatpush.bf16.msra.mxu0 0
    %125 = vmatpush.bf16.msra.mxu0 0
    %126 = vmatpush.bf16.msra.mxu0 0
    %127 = vmatpush.bf16.msra.mxu0 0
    %128 = vmatpush.bf16.msra.mxu0 0
    %129 = vmatpush.bf16.msra.mxu0 0
    %130 = vmatpush.bf16.msra.mxu0 0
    %131 = vmatpush.bf16.msra.mxu0 %v122
    %132 = vmatmul.bf16.gmra.mxu0 %v116
    %v133 = vpop.f32.mrf.mxu0
    %v134 = vadd.f32 %v102, %v133
    %v135 = vpop.f32.mrf.mxu0
    %v136 = vadd.f32 %v107, %v135
    %137 = vdwg.mxu0
    %v138 = vmax.f32 %v134, 0.0
    %v139 = vmax.f32 %v136, 0.0
    %v140 = vpack.c.bf16 %v139, %v138
    %v141 = vld [vmem:[%s5] sm:$0xf]
    %v142 = vld [vmem:[%s5 + $0x4] sm:$0xf]
    %v143 = vld [vmem:[%s5 + $0x8] sm:$0xf]
    %v144 = vld [vmem:[%s5 + $0xc] sm:$0xf]
    %v145 = vld [vmem:[%s6] sm:$0xff]
    %v146 = vld [vmem:[%s6 + $0x8] sm:$0xff]
    %v147 = vld [vmem:[%s6 + $0x10] sm:$0xff]
    %v148 = vld [vmem:[%s6 + $0x18] sm:$0xff]
    %150 = vset.pattern.permute.xlu0 0
    %151 = vperm.xlu0 %150, %v145
    %v152 = vpop.permute.xlu0 %151
    %155 = vset.pattern.permute.xlu0 0
    %156 = vperm.xlu0 %155, %v146
    %v157 = vpop.permute.xlu0 %156
    %160 = vset.pattern.permute.xlu0 0
    %161 = vperm.xlu0 %160, %v147
    %v162 = vpop.permute.xlu0 %161
    %165 = vset.pattern.permute.xlu0 0
    %166 = vperm.xlu0 %165, %v148
    %v167 = vpop.permute.xlu0 %166
    %v173 = vunpack.c.l.b16 %v141
    %v174 = vunpack.c.l.b16 %v142
    %v175 = vunpack.c.l.b16 %v143
    %v176 = vunpack.c.l.b16 %v144
    %v177 = vpack.c.b16 %v174, %v173
    %v178 = vpack.c.b16 %v176, %v175
    %vm179 = vcmask 130048
    %v181 = vsel %vm179, %v177, 0
    %v184 = vsel %vm179, %v178, 0
    %186 = vmatpush.bf16.msra.mxu0 0
    %187 = vmatpush.bf16.msra.mxu0 0
    %188 = vmatpush.bf16.msra.mxu0 0
    %189 = vmatpush.bf16.msra.mxu0 0
    %190 = vmatpush.bf16.msra.mxu0 0
    %191 = vmatpush.bf16.msra.mxu0 0
    %192 = vmatpush.bf16.msra.mxu0 0
    %193 = vmatpush.bf16.msra.mxu0 %v140
    %194 = vmatmul.bf16.gmra.mxu0 %v181
    %v195 = vpop.f32.mrf.mxu0
    %v196 = vadd.f32 %v152, %v195
    %v197 = vpop.f32.mrf.mxu0
    %v198 = vadd.f32 %v157, %v197
    %199 = vmatmul.bf16.gmra.mxu0 %v184
    %v200 = vpop.f32.mrf.mxu0
    %v201 = vadd.f32 %v162, %v200
    %v202 = vpop.f32.mrf.mxu0
    %v203 = vadd.f32 %v167, %v202
    %204 = vdwg.mxu0
    %v205 = vmax.f32 %v196, 0.0
    %v206 = vmax.f32 %v198, 0.0
    %v207 = vmax.f32 %v201, 0.0
    %v208 = vmax.f32 %v203, 0.0
    %s209 = scalar_lea.vmem %s0, 4
    %v210 = vld [vmem:[%s209] sm:$0xf]
    %v212 = vand.u32 %v210, %v120
    %214 = vmatpush.bf16.msra.mxu0 0
    %215 = vmatpush.bf16.msra.mxu0 0
    %216 = vmatpush.bf16.msra.mxu0 0
    %217 = vmatpush.bf16.msra.mxu0 0
    %218 = vmatpush.bf16.msra.mxu0 0
    %219 = vmatpush.bf16.msra.mxu0 0
    %220 = vmatpush.bf16.msra.mxu0 0
    %221 = vmatpush.bf16.msra.mxu0 %v212
    %222 = vmatmul.bf16.gmra.mxu0 %v116
    %v223 = vpop.f32.mrf.mxu0
    %v224 = vadd.f32 %v102, %v223
    %v225 = vpop.f32.mrf.mxu0
    %v226 = vadd.f32 %v107, %v225
    %227 = vdwg.mxu0
    %v228 = vmax.f32 %v224, 0.0
    %v229 = vmax.f32 %v226, 0.0
    %v230 = vpack.c.bf16 %v229, %v228
    %231 = vmatpush.bf16.msra.mxu0 0
    %232 = vmatpush.bf16.msra.mxu0 0
    %233 = vmatpush.bf16.msra.mxu0 0
    %234 = vmatpush.bf16.msra.mxu0 0
    %235 = vmatpush.bf16.msra.mxu0 0
    %236 = vmatpush.bf16.msra.mxu0 0
    %237 = vmatpush.bf16.msra.mxu0 0
    %238 = vmatpush.bf16.msra.mxu0 %v230
    %239 = vmatmul.bf16.gmra.mxu0 %v181
    %v240 = vpop.f32.mrf.mxu0
    %v241 = vadd.f32 %v152, %v240
    %v242 = vpop.f32.mrf.mxu0
    %v243 = vadd.f32 %v157, %v242
    %244 = vmatmul.bf16.gmra.mxu0 %v184
    %v245 = vpop.f32.mrf.mxu0
    %v246 = vadd.f32 %v162, %v245
    %v247 = vpop.f32.mrf.mxu0
    %v248 = vadd.f32 %v167, %v247
    %249 = vdwg.mxu0
    %v250 = vmax.f32 %v241, 0.0
    %v251 = vmax.f32 %v243, 0.0
    %v252 = vmax.f32 %v246, 0.0
    %v253 = vmax.f32 %v248, 0.0
    %v254 = vmax.f32 %v205, %v250
    %v255 = vmax.f32 %v206, %v251
    %v256 = vmax.f32 %v207, %v252
    %v257 = vmax.f32 %v208, %v253
    %s258 = scalar_lea.vmem %s0, 8
    %v259 = vld [vmem:[%s258] sm:$0xf]
    %v261 = vand.u32 %v259, %v120
    %263 = vmatpush.bf16.msra.mxu0 0
    %264 = vmatpush.bf16.msra.mxu0 0
    %265 = vmatpush.bf16.msra.mxu0 0
    %266 = vmatpush.bf16.msra.mxu0 0
    %267 = vmatpush.bf16.msra.mxu0 0
    %268 = vmatpush.bf16.msra.mxu0 0
    %269 = vmatpush.bf16.msra.mxu0 0
    %270 = vmatpush.bf16.msra.mxu0 %v261
    %271 = vmatmul.bf16.gmra.mxu0 %v116
    %v272 = vpop.f32.mrf.mxu0
    %v273 = vadd.f32 %v102, %v272
    %v274 = vpop.f32.mrf.mxu0
    %v275 = vadd.f32 %v107, %v274
    %276 = vdwg.mxu0
    %v277 = vmax.f32 %v273, 0.0
    %v278 = vmax.f32 %v275, 0.0
    %v279 = vpack.c.bf16 %v278, %v277
    %280 = vmatpush.bf16.msra.mxu0 0
    %281 = vmatpush.bf16.msra.mxu0 0
    %282 = vmatpush.bf16.msra.mxu0 0
    %283 = vmatpush.bf16.msra.mxu0 0
    %284 = vmatpush.bf16.msra.mxu0 0
    %285 = vmatpush.bf16.msra.mxu0 0
    %286 = vmatpush.bf16.msra.mxu0 0
    %287 = vmatpush.bf16.msra.mxu0 %v279
    %288 = vmatmul.bf16.gmra.mxu0 %v181
    %v289 = vpop.f32.mrf.mxu0
    %v290 = vadd.f32 %v152, %v289
    %v291 = vpop.f32.mrf.mxu0
    %v292 = vadd.f32 %v157, %v291
    %293 = vmatmul.bf16.gmra.mxu0 %v184
    %v294 = vpop.f32.mrf.mxu0
    %v295 = vadd.f32 %v162, %v294
    %v296 = vpop.f32.mrf.mxu0
    %v297 = vadd.f32 %v167, %v296
    %298 = vdwg.mxu0
    %v299 = vmax.f32 %v290, 0.0
    %v300 = vmax.f32 %v292, 0.0
    %v301 = vmax.f32 %v295, 0.0
    %v302 = vmax.f32 %v297, 0.0
    %v303 = vmax.f32 %v254, %v299
    %v304 = vmax.f32 %v255, %v300
    %v305 = vmax.f32 %v256, %v301
    %v306 = vmax.f32 %v257, %v302
    %s307 = scalar_lea.vmem %s0, 12
    %v308 = vld [vmem:[%s307] sm:$0xf]
    %v310 = vand.u32 %v308, %v120
    %312 = vmatpush.bf16.msra.mxu0 0
    %313 = vmatpush.bf16.msra.mxu0 0
    %314 = vmatpush.bf16.msra.mxu0 0
    %315 = vmatpush.bf16.msra.mxu0 0
    %316 = vmatpush.bf16.msra.mxu0 0
    %317 = vmatpush.bf16.msra.mxu0 0
    %318 = vmatpush.bf16.msra.mxu0 0
    %319 = vmatpush.bf16.msra.mxu0 %v310
    %320 = vmatmul.bf16.gmra.mxu0 %v116
    %v321 = vpop.f32.mrf.mxu0
    %v322 = vadd.f32 %v102, %v321
    %v323 = vpop.f32.mrf.mxu0
    %v324 = vadd.f32 %v107, %v323
    %325 = vdwg.mxu0
    %v326 = vmax.f32 %v322, 0.0
    %v327 = vmax.f32 %v324, 0.0
    %v328 = vpack.c.bf16 %v327, %v326
    %329 = vmatpush.bf16.msra.mxu0 0
    %330 = vmatpush.bf16.msra.mxu0 0
    %331 = vmatpush.bf16.msra.mxu0 0
    %332 = vmatpush.bf16.msra.mxu0 0
    %333 = vmatpush.bf16.msra.mxu0 0
    %334 = vmatpush.bf16.msra.mxu0 0
    %335 = vmatpush.bf16.msra.mxu0 0
    %336 = vmatpush.bf16.msra.mxu0 %v328
    %337 = vmatmul.bf16.gmra.mxu0 %v181
    %v338 = vpop.f32.mrf.mxu0
    %v339 = vadd.f32 %v152, %v338
    %v340 = vpop.f32.mrf.mxu0
    %v341 = vadd.f32 %v157, %v340
    %342 = vmatmul.bf16.gmra.mxu0 %v184
    %v343 = vpop.f32.mrf.mxu0
    %v344 = vadd.f32 %v162, %v343
    %v345 = vpop.f32.mrf.mxu0
    %v346 = vadd.f32 %v167, %v345
    %347 = vdwg.mxu0
    %v348 = vmax.f32 %v339, 0.0
    %v349 = vmax.f32 %v341, 0.0
    %v350 = vmax.f32 %v344, 0.0
    %v351 = vmax.f32 %v346, 0.0
    %v352 = vmax.f32 %v303, %v348
    %v353 = vmax.f32 %v304, %v349
    %v354 = vmax.f32 %v305, %v350
    %v355 = vmax.f32 %v306, %v351
    %s356 = scalar_lea.vmem %s0, 16
    %v357 = vld [vmem:[%s356] sm:$0xf]
    %v359 = vand.u32 %v357, %v120
    %361 = vmatpush.bf16.msra.mxu0 0
    %362 = vmatpush.bf16.msra.mxu0 0
    %363 = vmatpush.bf16.msra.mxu0 0
    %364 = vmatpush.bf16.msra.mxu0 0
    %365 = vmatpush.bf16.msra.mxu0 0
    %366 = vmatpush.bf16.msra.mxu0 0
    %367 = vmatpush.bf16.msra.mxu0 0
    %368 = vmatpush.bf16.msra.mxu0 %v359
    %369 = vmatmul.bf16.gmra.mxu0 %v116
    %v370 = vpop.f32.mrf.mxu0
    %v371 = vadd.f32 %v102, %v370
    %v372 = vpop.f32.mrf.mxu0
    %v373 = vadd.f32 %v107, %v372
    %374 = vdwg.mxu0
    %v375 = vmax.f32 %v371, 0.0
    %v376 = vmax.f32 %v373, 0.0
    %v377 = vpack.c.bf16 %v376, %v375
    %378 = vmatpush.bf16.msra.mxu0 0
    %379 = vmatpush.bf16.msra.mxu0 0
    %380 = vmatpush.bf16.msra.mxu0 0
    %381 = vmatpush.bf16.msra.mxu0 0
    %382 = vmatpush.bf16.msra.mxu0 0
    %383 = vmatpush.bf16.msra.mxu0 0
    %384 = vmatpush.bf16.msra.mxu0 0
    %385 = vmatpush.bf16.msra.mxu0 %v377
    %386 = vmatmul.bf16.gmra.mxu0 %v181
    %v387 = vpop.f32.mrf.mxu0
    %v388 = vadd.f32 %v152, %v387
    %v389 = vpop.f32.mrf.mxu0
    %v390 = vadd.f32 %v157, %v389
    %391 = vmatmul.bf16.gmra.mxu0 %v184
    %v392 = vpop.f32.mrf.mxu0
    %v393 = vadd.f32 %v162, %v392
    %v394 = vpop.f32.mrf.mxu0
    %v395 = vadd.f32 %v167, %v394
    %396 = vdwg.mxu0
    %v397 = vmax.f32 %v388, 0.0
    %v398 = vmax.f32 %v390, 0.0
    %v399 = vmax.f32 %v393, 0.0
    %v400 = vmax.f32 %v395, 0.0
    %v401 = vmax.f32 %v352, %v397
    %v402 = vmax.f32 %v353, %v398
    %v403 = vmax.f32 %v354, %v399
    %v404 = vmax.f32 %v355, %v400
    %s405 = scalar_lea.vmem %s0, 20
    %v406 = vld [vmem:[%s405] sm:$0xf]
    %v408 = vand.u32 %v406, %v120
    %410 = vmatpush.bf16.msra.mxu0 0
    %411 = vmatpush.bf16.msra.mxu0 0
    %412 = vmatpush.bf16.msra.mxu0 0
    %413 = vmatpush.bf16.msra.mxu0 0
    %414 = vmatpush.bf16.msra.mxu0 0
    %415 = vmatpush.bf16.msra.mxu0 0
    %416 = vmatpush.bf16.msra.mxu0 0
    %417 = vmatpush.bf16.msra.mxu0 %v408
    %418 = vmatmul.bf16.gmra.mxu0 %v116
    %v419 = vpop.f32.mrf.mxu0
    %v420 = vadd.f32 %v102, %v419
    %v421 = vpop.f32.mrf.mxu0
    %v422 = vadd.f32 %v107, %v421
    %423 = vdwg.mxu0
    %v424 = vmax.f32 %v420, 0.0
    %v425 = vmax.f32 %v422, 0.0
    %v426 = vpack.c.bf16 %v425, %v424
    %427 = vmatpush.bf16.msra.mxu0 0
    %428 = vmatpush.bf16.msra.mxu0 0
    %429 = vmatpush.bf16.msra.mxu0 0
    %430 = vmatpush.bf16.msra.mxu0 0
    %431 = vmatpush.bf16.msra.mxu0 0
    %432 = vmatpush.bf16.msra.mxu0 0
    %433 = vmatpush.bf16.msra.mxu0 0
    %434 = vmatpush.bf16.msra.mxu0 %v426
    %435 = vmatmul.bf16.gmra.mxu0 %v181
    %v436 = vpop.f32.mrf.mxu0
    %v437 = vadd.f32 %v152, %v436
    %v438 = vpop.f32.mrf.mxu0
    %v439 = vadd.f32 %v157, %v438
    %440 = vmatmul.bf16.gmra.mxu0 %v184
    %v441 = vpop.f32.mrf.mxu0
    %v442 = vadd.f32 %v162, %v441
    %v443 = vpop.f32.mrf.mxu0
    %v444 = vadd.f32 %v167, %v443
    %445 = vdwg.mxu0
    %v446 = vmax.f32 %v437, 0.0
    %v447 = vmax.f32 %v439, 0.0
    %v448 = vmax.f32 %v442, 0.0
    %v449 = vmax.f32 %v444, 0.0
    %v450 = vmax.f32 %v401, %v446
    %v451 = vmax.f32 %v402, %v447
    %v452 = vmax.f32 %v403, %v448
    %v453 = vmax.f32 %v404, %v449
    %s454 = scalar_lea.vmem %s0, 24
    %v455 = vld [vmem:[%s454] sm:$0xf]
    %v457 = vand.u32 %v455, %v120
    %459 = vmatpush.bf16.msra.mxu0 0
    %460 = vmatpush.bf16.msra.mxu0 0
    %461 = vmatpush.bf16.msra.mxu0 0
    %462 = vmatpush.bf16.msra.mxu0 0
    %463 = vmatpush.bf16.msra.mxu0 0
    %464 = vmatpush.bf16.msra.mxu0 0
    %465 = vmatpush.bf16.msra.mxu0 0
    %466 = vmatpush.bf16.msra.mxu0 %v457
    %467 = vmatmul.bf16.gmra.mxu0 %v116
    %v468 = vpop.f32.mrf.mxu0
    %v469 = vadd.f32 %v102, %v468
    %v470 = vpop.f32.mrf.mxu0
    %v471 = vadd.f32 %v107, %v470
    %472 = vdwg.mxu0
    %v473 = vmax.f32 %v469, 0.0
    %v474 = vmax.f32 %v471, 0.0
    %v475 = vpack.c.bf16 %v474, %v473
    %476 = vmatpush.bf16.msra.mxu0 0
    %477 = vmatpush.bf16.msra.mxu0 0
    %478 = vmatpush.bf16.msra.mxu0 0
    %479 = vmatpush.bf16.msra.mxu0 0
    %480 = vmatpush.bf16.msra.mxu0 0
    %481 = vmatpush.bf16.msra.mxu0 0
    %482 = vmatpush.bf16.msra.mxu0 0
    %483 = vmatpush.bf16.msra.mxu0 %v475
    %484 = vmatmul.bf16.gmra.mxu0 %v181
    %v485 = vpop.f32.mrf.mxu0
    %v486 = vadd.f32 %v152, %v485
    %v487 = vpop.f32.mrf.mxu0
    %v488 = vadd.f32 %v157, %v487
    %489 = vmatmul.bf16.gmra.mxu0 %v184
    %v490 = vpop.f32.mrf.mxu0
    %v491 = vadd.f32 %v162, %v490
    %v492 = vpop.f32.mrf.mxu0
    %v493 = vadd.f32 %v167, %v492
    %494 = vdwg.mxu0
    %v495 = vmax.f32 %v486, 0.0
    %v496 = vmax.f32 %v488, 0.0
    %v497 = vmax.f32 %v491, 0.0
    %v498 = vmax.f32 %v493, 0.0
    %v499 = vmax.f32 %v450, %v495
    %v500 = vmax.f32 %v451, %v496
    %v501 = vmax.f32 %v452, %v497
    %v502 = vmax.f32 %v453, %v498
    %s503 = scalar_lea.vmem %s0, 28
    %v504 = vld [vmem:[%s503] sm:$0xf]
    %v506 = vand.u32 %v504, %v120
    %508 = vmatpush.bf16.msra.mxu0 0
    %509 = vmatpush.bf16.msra.mxu0 0
    %510 = vmatpush.bf16.msra.mxu0 0
    %511 = vmatpush.bf16.msra.mxu0 0
    %512 = vmatpush.bf16.msra.mxu0 0
    %513 = vmatpush.bf16.msra.mxu0 0
    %514 = vmatpush.bf16.msra.mxu0 0
    %515 = vmatpush.bf16.msra.mxu0 %v506
    %516 = vmatmul.bf16.gmra.mxu0 %v116
    %v517 = vpop.f32.mrf.mxu0
    %v518 = vadd.f32 %v102, %v517
    %v519 = vpop.f32.mrf.mxu0
    %v520 = vadd.f32 %v107, %v519
    %521 = vdwg.mxu0
    %v522 = vmax.f32 %v518, 0.0
    %v523 = vmax.f32 %v520, 0.0
    %v524 = vpack.c.bf16 %v523, %v522
    %525 = vmatpush.bf16.msra.mxu0 0
    %526 = vmatpush.bf16.msra.mxu0 0
    %527 = vmatpush.bf16.msra.mxu0 0
    %528 = vmatpush.bf16.msra.mxu0 0
    %529 = vmatpush.bf16.msra.mxu0 0
    %530 = vmatpush.bf16.msra.mxu0 0
    %531 = vmatpush.bf16.msra.mxu0 0
    %532 = vmatpush.bf16.msra.mxu0 %v524
    %533 = vmatmul.bf16.gmra.mxu0 %v181
    %v534 = vpop.f32.mrf.mxu0
    %v535 = vadd.f32 %v152, %v534
    %v536 = vpop.f32.mrf.mxu0
    %v537 = vadd.f32 %v157, %v536
    %538 = vmatmul.bf16.gmra.mxu0 %v184
    %v539 = vpop.f32.mrf.mxu0
    %v540 = vadd.f32 %v162, %v539
    %v541 = vpop.f32.mrf.mxu0
    %v542 = vadd.f32 %v167, %v541
    %543 = vdwg.mxu0
    %v544 = vmax.f32 %v535, 0.0
    %v545 = vmax.f32 %v537, 0.0
    %v546 = vmax.f32 %v540, 0.0
    %v547 = vmax.f32 %v542, 0.0
    %v548 = vmax.f32 %v499, %v544
    %v549 = vmax.f32 %v500, %v545
    %v550 = vmax.f32 %v501, %v546
    %v551 = vmax.f32 %v502, %v547
    %v552 = vpack.c.bf16 %v548, %v548
    %v553 = vpack.c.bf16 %v549, %v549
    %v554 = vpack.c.bf16 %v550, %v550
    %v555 = vpack.c.bf16 %v551, %v551
    %v556 = vld [vmem:[%s1] sm:$0xf]
    %v557 = vld [vmem:[%s7] sm:$0xf]
    %v558 = vld [vmem:[%s7 + $0x4] sm:$0xf]
    %v559 = vld [vmem:[%s8] sm:$0xff]
    %v560 = vld [vmem:[%s8 + $0x8] sm:$0xff]
    %562 = vset.pattern.permute.xlu0 0
    %563 = vperm.xlu0 %562, %v559
    %v564 = vpop.permute.xlu0 %563
    %567 = vset.pattern.permute.xlu0 0
    %568 = vperm.xlu0 %567, %v560
    %v569 = vpop.permute.xlu0 %568
    %v573 = vunpack.c.l.b16 %v557
    %v574 = vunpack.c.l.b16 %v558
    %v575 = vpack.c.b16 %v574, %v573
    %v577 = vsel %vm114, %v575, 0
    %v580 = vand.u32 %v556, %v120
    %582 = vmatpush.bf16.msra.mxu0 0
    %583 = vmatpush.bf16.msra.mxu0 0
    %584 = vmatpush.bf16.msra.mxu0 0
    %585 = vmatpush.bf16.msra.mxu0 0
    %586 = vmatpush.bf16.msra.mxu0 0
    %587 = vmatpush.bf16.msra.mxu0 0
    %588 = vmatpush.bf16.msra.mxu0 0
    %589 = vmatpush.bf16.msra.mxu0 %v580
    %590 = vmatmul.bf16.gmra.mxu0 %v577
    %v591 = vpop.f32.mrf.mxu0
    %v592 = vadd.f32 %v564, %v591
    %v593 = vpop.f32.mrf.mxu0
    %v594 = vadd.f32 %v569, %v593
    %595 = vdwg.mxu0
    %v596 = vmax.f32 %v592, 0.0
    %v597 = vmax.f32 %v594, 0.0
    %v598 = vpack.c.bf16 %v597, %v596
    %v599 = vld [vmem:[%s9] sm:$0xf]
    %v600 = vld [vmem:[%s9 + $0x4] sm:$0xf]
    %v601 = vld [vmem:[%s9 + $0x8] sm:$0xf]
    %v602 = vld [vmem:[%s9 + $0xc] sm:$0xf]
    %v603 = vld [vmem:[%s10] sm:$0xff]
    %v604 = vld [vmem:[%s10 + $0x8] sm:$0xff]
    %v605 = vld [vmem:[%s10 + $0x10] sm:$0xff]
    %v606 = vld [vmem:[%s10 + $0x18] sm:$0xff]
    %608 = vset.pattern.permute.xlu0 0
    %609 = vperm.xlu0 %608, %v603
    %v610 = vpop.permute.xlu0 %609
    %613 = vset.pattern.permute.xlu0 0
    %614 = vperm.xlu0 %613, %v604
    %v615 = vpop.permute.xlu0 %614
    %618 = vset.pattern.permute.xlu0 0
    %619 = vperm.xlu0 %618, %v605
    %v620 = vpop.permute.xlu0 %619
    %623 = vset.pattern.permute.xlu0 0
    %624 = vperm.xlu0 %623, %v606
    %v625 = vpop.permute.xlu0 %624
    %v631 = vunpack.c.l.b16 %v599
    %v632 = vunpack.c.l.b16 %v600
    %v633 = vunpack.c.l.b16 %v601
    %v634 = vunpack.c.l.b16 %v602
    %v635 = vpack.c.b16 %v632, %v631
    %v636 = vpack.c.b16 %v634, %v633
    %v638 = vsel %vm179, %v635, 0
    %v641 = vsel %vm179, %v636, 0
    %643 = vmatpush.bf16.msra.mxu0 0
    %644 = vmatpush.bf16.msra.mxu0 0
    %645 = vmatpush.bf16.msra.mxu0 0
    %646 = vmatpush.bf16.msra.mxu0 0
    %647 = vmatpush.bf16.msra.mxu0 0
    %648 = vmatpush.bf16.msra.mxu0 0
    %649 = vmatpush.bf16.msra.mxu0 0
    %650 = vmatpush.bf16.msra.mxu0 %v598
    %651 = vmatmul.bf16.gmra.mxu0 %v638
    %v652 = vpop.f32.mrf.mxu0
    %v653 = vadd.f32 %v610, %v652
    %v654 = vpop.f32.mrf.mxu0
    %v655 = vadd.f32 %v615, %v654
    %656 = vmatmul.bf16.gmra.mxu0 %v641
    %v657 = vpop.f32.mrf.mxu0
    %v658 = vadd.f32 %v620, %v657
    %v659 = vpop.f32.mrf.mxu0
    %v660 = vadd.f32 %v625, %v659
    %661 = vdwg.mxu0
    %v662 = vmax.f32 %v653, 0.0
    %v663 = vmax.f32 %v655, 0.0
    %v664 = vmax.f32 %v658, 0.0
    %v665 = vmax.f32 %v660, 0.0
    %s666 = scalar_lea.vmem %s1, 4
    %v667 = vld [vmem:[%s666] sm:$0xf]
    %v669 = vand.u32 %v667, %v120
    %671 = vmatpush.bf16.msra.mxu0 0
    %672 = vmatpush.bf16.msra.mxu0 0
    %673 = vmatpush.bf16.msra.mxu0 0
    %674 = vmatpush.bf16.msra.mxu0 0
    %675 = vmatpush.bf16.msra.mxu0 0
    %676 = vmatpush.bf16.msra.mxu0 0
    %677 = vmatpush.bf16.msra.mxu0 0
    %678 = vmatpush.bf16.msra.mxu0 %v669
    %679 = vmatmul.bf16.gmra.mxu0 %v577
    %v680 = vpop.f32.mrf.mxu0
    %v681 = vadd.f32 %v564, %v680
    %v682 = vpop.f32.mrf.mxu0
    %v683 = vadd.f32 %v569, %v682
    %684 = vdwg.mxu0
    %v685 = vmax.f32 %v681, 0.0
    %v686 = vmax.f32 %v683, 0.0
    %v687 = vpack.c.bf16 %v686, %v685
    %688 = vmatpush.bf16.msra.mxu0 0
    %689 = vmatpush.bf16.msra.mxu0 0
    %690 = vmatpush.bf16.msra.mxu0 0
    %691 = vmatpush.bf16.msra.mxu0 0
    %692 = vmatpush.bf16.msra.mxu0 0
    %693 = vmatpush.bf16.msra.mxu0 0
    %694 = vmatpush.bf16.msra.mxu0 0
    %695 = vmatpush.bf16.msra.mxu0 %v687
    %696 = vmatmul.bf16.gmra.mxu0 %v638
    %v697 = vpop.f32.mrf.mxu0
    %v698 = vadd.f32 %v610, %v697
    %v699 = vpop.f32.mrf.mxu0
    %v700 = vadd.f32 %v615, %v699
    %701 = vmatmul.bf16.gmra.mxu0 %v641
    %v702 = vpop.f32.mrf.mxu0
    %v703 = vadd.f32 %v620, %v702
    %v704 = vpop.f32.mrf.mxu0
    %v705 = vadd.f32 %v625, %v704
    %706 = vdwg.mxu0
    %v707 = vmax.f32 %v698, 0.0
    %v708 = vmax.f32 %v700, 0.0
    %v709 = vmax.f32 %v703, 0.0
    %v710 = vmax.f32 %v705, 0.0
    %v711 = vmax.f32 %v662, %v707
    %v712 = vmax.f32 %v663, %v708
    %v713 = vmax.f32 %v664, %v709
    %v714 = vmax.f32 %v665, %v710
    %s715 = scalar_lea.vmem %s1, 8
    %v716 = vld [vmem:[%s715] sm:$0xf]
    %v718 = vand.u32 %v716, %v120
    %720 = vmatpush.bf16.msra.mxu0 0
    %721 = vmatpush.bf16.msra.mxu0 0
    %722 = vmatpush.bf16.msra.mxu0 0
    %723 = vmatpush.bf16.msra.mxu0 0
    %724 = vmatpush.bf16.msra.mxu0 0
    %725 = vmatpush.bf16.msra.mxu0 0
    %726 = vmatpush.bf16.msra.mxu0 0
    %727 = vmatpush.bf16.msra.mxu0 %v718
    %728 = vmatmul.bf16.gmra.mxu0 %v577
    %v729 = vpop.f32.mrf.mxu0
    %v730 = vadd.f32 %v564, %v729
    %v731 = vpop.f32.mrf.mxu0
    %v732 = vadd.f32 %v569, %v731
    %733 = vdwg.mxu0
    %v734 = vmax.f32 %v730, 0.0
    %v735 = vmax.f32 %v732, 0.0
    %v736 = vpack.c.bf16 %v735, %v734
    %737 = vmatpush.bf16.msra.mxu0 0
    %738 = vmatpush.bf16.msra.mxu0 0
    %739 = vmatpush.bf16.msra.mxu0 0
    %740 = vmatpush.bf16.msra.mxu0 0
    %741 = vmatpush.bf16.msra.mxu0 0
    %742 = vmatpush.bf16.msra.mxu0 0
    %743 = vmatpush.bf16.msra.mxu0 0
    %744 = vmatpush.bf16.msra.mxu0 %v736
    %745 = vmatmul.bf16.gmra.mxu0 %v638
    %v746 = vpop.f32.mrf.mxu0
    %v747 = vadd.f32 %v610, %v746
    %v748 = vpop.f32.mrf.mxu0
    %v749 = vadd.f32 %v615, %v748
    %750 = vmatmul.bf16.gmra.mxu0 %v641
    %v751 = vpop.f32.mrf.mxu0
    %v752 = vadd.f32 %v620, %v751
    %v753 = vpop.f32.mrf.mxu0
    %v754 = vadd.f32 %v625, %v753
    %755 = vdwg.mxu0
    %v756 = vmax.f32 %v747, 0.0
    %v757 = vmax.f32 %v749, 0.0
    %v758 = vmax.f32 %v752, 0.0
    %v759 = vmax.f32 %v754, 0.0
    %v760 = vmax.f32 %v711, %v756
    %v761 = vmax.f32 %v712, %v757
    %v762 = vmax.f32 %v713, %v758
    %v763 = vmax.f32 %v714, %v759
    %s764 = scalar_lea.vmem %s1, 12
    %v765 = vld [vmem:[%s764] sm:$0xf]
    %v767 = vand.u32 %v765, %v120
    %769 = vmatpush.bf16.msra.mxu0 0
    %770 = vmatpush.bf16.msra.mxu0 0
    %771 = vmatpush.bf16.msra.mxu0 0
    %772 = vmatpush.bf16.msra.mxu0 0
    %773 = vmatpush.bf16.msra.mxu0 0
    %774 = vmatpush.bf16.msra.mxu0 0
    %775 = vmatpush.bf16.msra.mxu0 0
    %776 = vmatpush.bf16.msra.mxu0 %v767
    %777 = vmatmul.bf16.gmra.mxu0 %v577
    %v778 = vpop.f32.mrf.mxu0
    %v779 = vadd.f32 %v564, %v778
    %v780 = vpop.f32.mrf.mxu0
    %v781 = vadd.f32 %v569, %v780
    %782 = vdwg.mxu0
    %v783 = vmax.f32 %v779, 0.0
    %v784 = vmax.f32 %v781, 0.0
    %v785 = vpack.c.bf16 %v784, %v783
    %786 = vmatpush.bf16.msra.mxu0 0
    %787 = vmatpush.bf16.msra.mxu0 0
    %788 = vmatpush.bf16.msra.mxu0 0
    %789 = vmatpush.bf16.msra.mxu0 0
    %790 = vmatpush.bf16.msra.mxu0 0
    %791 = vmatpush.bf16.msra.mxu0 0
    %792 = vmatpush.bf16.msra.mxu0 0
    %793 = vmatpush.bf16.msra.mxu0 %v785
    %794 = vmatmul.bf16.gmra.mxu0 %v638
    %v795 = vpop.f32.mrf.mxu0
    %v796 = vadd.f32 %v610, %v795
    %v797 = vpop.f32.mrf.mxu0
    %v798 = vadd.f32 %v615, %v797
    %799 = vmatmul.bf16.gmra.mxu0 %v641
    %v800 = vpop.f32.mrf.mxu0
    %v801 = vadd.f32 %v620, %v800
    %v802 = vpop.f32.mrf.mxu0
    %v803 = vadd.f32 %v625, %v802
    %804 = vdwg.mxu0
    %v805 = vmax.f32 %v796, 0.0
    %v806 = vmax.f32 %v798, 0.0
    %v807 = vmax.f32 %v801, 0.0
    %v808 = vmax.f32 %v803, 0.0
    %v809 = vmax.f32 %v760, %v805
    %v810 = vmax.f32 %v761, %v806
    %v811 = vmax.f32 %v762, %v807
    %v812 = vmax.f32 %v763, %v808
    %s813 = scalar_lea.vmem %s1, 16
    %v814 = vld [vmem:[%s813] sm:$0xf]
    %v816 = vand.u32 %v814, %v120
    %818 = vmatpush.bf16.msra.mxu0 0
    %819 = vmatpush.bf16.msra.mxu0 0
    %820 = vmatpush.bf16.msra.mxu0 0
    %821 = vmatpush.bf16.msra.mxu0 0
    %822 = vmatpush.bf16.msra.mxu0 0
    %823 = vmatpush.bf16.msra.mxu0 0
    %824 = vmatpush.bf16.msra.mxu0 0
    %825 = vmatpush.bf16.msra.mxu0 %v816
    %826 = vmatmul.bf16.gmra.mxu0 %v577
    %v827 = vpop.f32.mrf.mxu0
    %v828 = vadd.f32 %v564, %v827
    %v829 = vpop.f32.mrf.mxu0
    %v830 = vadd.f32 %v569, %v829
    %831 = vdwg.mxu0
    %v832 = vmax.f32 %v828, 0.0
    %v833 = vmax.f32 %v830, 0.0
    %v834 = vpack.c.bf16 %v833, %v832
    %835 = vmatpush.bf16.msra.mxu0 0
    %836 = vmatpush.bf16.msra.mxu0 0
    %837 = vmatpush.bf16.msra.mxu0 0
    %838 = vmatpush.bf16.msra.mxu0 0
    %839 = vmatpush.bf16.msra.mxu0 0
    %840 = vmatpush.bf16.msra.mxu0 0
    %841 = vmatpush.bf16.msra.mxu0 0
    %842 = vmatpush.bf16.msra.mxu0 %v834
    %843 = vmatmul.bf16.gmra.mxu0 %v638
    %v844 = vpop.f32.mrf.mxu0
    %v845 = vadd.f32 %v610, %v844
    %v846 = vpop.f32.mrf.mxu0
    %v847 = vadd.f32 %v615, %v846
    %848 = vmatmul.bf16.gmra.mxu0 %v641
    %v849 = vpop.f32.mrf.mxu0
    %v850 = vadd.f32 %v620, %v849
    %v851 = vpop.f32.mrf.mxu0
    %v852 = vadd.f32 %v625, %v851
    %853 = vdwg.mxu0
    %v854 = vmax.f32 %v845, 0.0
    %v855 = vmax.f32 %v847, 0.0
    %v856 = vmax.f32 %v850, 0.0
    %v857 = vmax.f32 %v852, 0.0
    %v858 = vmax.f32 %v809, %v854
    %v859 = vmax.f32 %v810, %v855
    %v860 = vmax.f32 %v811, %v856
    %v861 = vmax.f32 %v812, %v857
    %s862 = scalar_lea.vmem %s1, 20
    %v863 = vld [vmem:[%s862] sm:$0xf]
    %v865 = vand.u32 %v863, %v120
    %867 = vmatpush.bf16.msra.mxu0 0
    %868 = vmatpush.bf16.msra.mxu0 0
    %869 = vmatpush.bf16.msra.mxu0 0
    %870 = vmatpush.bf16.msra.mxu0 0
    %871 = vmatpush.bf16.msra.mxu0 0
    %872 = vmatpush.bf16.msra.mxu0 0
    %873 = vmatpush.bf16.msra.mxu0 0
    %874 = vmatpush.bf16.msra.mxu0 %v865
    %875 = vmatmul.bf16.gmra.mxu0 %v577
    %v876 = vpop.f32.mrf.mxu0
    %v877 = vadd.f32 %v564, %v876
    %v878 = vpop.f32.mrf.mxu0
    %v879 = vadd.f32 %v569, %v878
    %880 = vdwg.mxu0
    %v881 = vmax.f32 %v877, 0.0
    %v882 = vmax.f32 %v879, 0.0
    %v883 = vpack.c.bf16 %v882, %v881
    %884 = vmatpush.bf16.msra.mxu0 0
    %885 = vmatpush.bf16.msra.mxu0 0
    %886 = vmatpush.bf16.msra.mxu0 0
    %887 = vmatpush.bf16.msra.mxu0 0
    %888 = vmatpush.bf16.msra.mxu0 0
    %889 = vmatpush.bf16.msra.mxu0 0
    %890 = vmatpush.bf16.msra.mxu0 0
    %891 = vmatpush.bf16.msra.mxu0 %v883
    %892 = vmatmul.bf16.gmra.mxu0 %v638
    %v893 = vpop.f32.mrf.mxu0
    %v894 = vadd.f32 %v610, %v893
    %v895 = vpop.f32.mrf.mxu0
    %v896 = vadd.f32 %v615, %v895
    %897 = vmatmul.bf16.gmra.mxu0 %v641
    %v898 = vpop.f32.mrf.mxu0
    %v899 = vadd.f32 %v620, %v898
    %v900 = vpop.f32.mrf.mxu0
    %v901 = vadd.f32 %v625, %v900
    %902 = vdwg.mxu0
    %v903 = vmax.f32 %v894, 0.0
    %v904 = vmax.f32 %v896, 0.0
    %v905 = vmax.f32 %v899, 0.0
    %v906 = vmax.f32 %v901, 0.0
    %v907 = vmax.f32 %v858, %v903
    %v908 = vmax.f32 %v859, %v904
    %v909 = vmax.f32 %v860, %v905
    %v910 = vmax.f32 %v861, %v906
    %s911 = scalar_lea.vmem %s1, 24
    %v912 = vld [vmem:[%s911] sm:$0xf]
    %v914 = vand.u32 %v912, %v120
    %916 = vmatpush.bf16.msra.mxu0 0
    %917 = vmatpush.bf16.msra.mxu0 0
    %918 = vmatpush.bf16.msra.mxu0 0
    %919 = vmatpush.bf16.msra.mxu0 0
    %920 = vmatpush.bf16.msra.mxu0 0
    %921 = vmatpush.bf16.msra.mxu0 0
    %922 = vmatpush.bf16.msra.mxu0 0
    %923 = vmatpush.bf16.msra.mxu0 %v914
    %924 = vmatmul.bf16.gmra.mxu0 %v577
    %v925 = vpop.f32.mrf.mxu0
    %v926 = vadd.f32 %v564, %v925
    %v927 = vpop.f32.mrf.mxu0
    %v928 = vadd.f32 %v569, %v927
    %929 = vdwg.mxu0
    %v930 = vmax.f32 %v926, 0.0
    %v931 = vmax.f32 %v928, 0.0
    %v932 = vpack.c.bf16 %v931, %v930
    %933 = vmatpush.bf16.msra.mxu0 0
    %934 = vmatpush.bf16.msra.mxu0 0
    %935 = vmatpush.bf16.msra.mxu0 0
    %936 = vmatpush.bf16.msra.mxu0 0
    %937 = vmatpush.bf16.msra.mxu0 0
    %938 = vmatpush.bf16.msra.mxu0 0
    %939 = vmatpush.bf16.msra.mxu0 0
    %940 = vmatpush.bf16.msra.mxu0 %v932
    %941 = vmatmul.bf16.gmra.mxu0 %v638
    %v942 = vpop.f32.mrf.mxu0
    %v943 = vadd.f32 %v610, %v942
    %v944 = vpop.f32.mrf.mxu0
    %v945 = vadd.f32 %v615, %v944
    %946 = vmatmul.bf16.gmra.mxu0 %v641
    %v947 = vpop.f32.mrf.mxu0
    %v948 = vadd.f32 %v620, %v947
    %v949 = vpop.f32.mrf.mxu0
    %v950 = vadd.f32 %v625, %v949
    %951 = vdwg.mxu0
    %v952 = vmax.f32 %v943, 0.0
    %v953 = vmax.f32 %v945, 0.0
    %v954 = vmax.f32 %v948, 0.0
    %v955 = vmax.f32 %v950, 0.0
    %v956 = vmax.f32 %v907, %v952
    %v957 = vmax.f32 %v908, %v953
    %v958 = vmax.f32 %v909, %v954
    %v959 = vmax.f32 %v910, %v955
    %s960 = scalar_lea.vmem %s1, 28
    %v961 = vld [vmem:[%s960] sm:$0xf]
    %v963 = vand.u32 %v961, %v120
    %965 = vmatpush.bf16.msra.mxu0 0
    %966 = vmatpush.bf16.msra.mxu0 0
    %967 = vmatpush.bf16.msra.mxu0 0
    %968 = vmatpush.bf16.msra.mxu0 0
    %969 = vmatpush.bf16.msra.mxu0 0
    %970 = vmatpush.bf16.msra.mxu0 0
    %971 = vmatpush.bf16.msra.mxu0 0
    %972 = vmatpush.bf16.msra.mxu0 %v963
    %973 = vmatmul.bf16.gmra.mxu0 %v577
    %v974 = vpop.f32.mrf.mxu0
    %v975 = vadd.f32 %v564, %v974
    %v976 = vpop.f32.mrf.mxu0
    %v977 = vadd.f32 %v569, %v976
    %978 = vdwg.mxu0
    %v979 = vmax.f32 %v975, 0.0
    %v980 = vmax.f32 %v977, 0.0
    %v981 = vpack.c.bf16 %v980, %v979
    %982 = vmatpush.bf16.msra.mxu0 0
    %983 = vmatpush.bf16.msra.mxu0 0
    %984 = vmatpush.bf16.msra.mxu0 0
    %985 = vmatpush.bf16.msra.mxu0 0
    %986 = vmatpush.bf16.msra.mxu0 0
    %987 = vmatpush.bf16.msra.mxu0 0
    %988 = vmatpush.bf16.msra.mxu0 0
    %989 = vmatpush.bf16.msra.mxu0 %v981
    %990 = vmatmul.bf16.gmra.mxu0 %v638
    %v991 = vpop.f32.mrf.mxu0
    %v992 = vadd.f32 %v610, %v991
    %v993 = vpop.f32.mrf.mxu0
    %v994 = vadd.f32 %v615, %v993
    %995 = vmatmul.bf16.gmra.mxu0 %v641
    %v996 = vpop.f32.mrf.mxu0
    %v997 = vadd.f32 %v620, %v996
    %v998 = vpop.f32.mrf.mxu0
    %v999 = vadd.f32 %v625, %v998
    %1000 = vdwg.mxu0
    %v1001 = vmax.f32 %v992, 0.0
    %v1002 = vmax.f32 %v994, 0.0
    %v1003 = vmax.f32 %v997, 0.0
    %v1004 = vmax.f32 %v999, 0.0
    %v1005 = vmax.f32 %v956, %v1001
    %v1006 = vmax.f32 %v957, %v1002
    %v1007 = vmax.f32 %v958, %v1003
    %v1008 = vmax.f32 %v959, %v1004
    %s1009 = scalar_lea.vmem %s1, 32
    %v1010 = vld [vmem:[%s1009] sm:$0xf]
    %v1012 = vand.u32 %v1010, %v120
    %1014 = vmatpush.bf16.msra.mxu0 0
    %1015 = vmatpush.bf16.msra.mxu0 0
    %1016 = vmatpush.bf16.msra.mxu0 0
    %1017 = vmatpush.bf16.msra.mxu0 0
    %1018 = vmatpush.bf16.msra.mxu0 0
    %1019 = vmatpush.bf16.msra.mxu0 0
    %1020 = vmatpush.bf16.msra.mxu0 0
    %1021 = vmatpush.bf16.msra.mxu0 %v1012
    %1022 = vmatmul.bf16.gmra.mxu0 %v577
    %v1023 = vpop.f32.mrf.mxu0
    %v1024 = vadd.f32 %v564, %v1023
    %v1025 = vpop.f32.mrf.mxu0
    %v1026 = vadd.f32 %v569, %v1025
    %1027 = vdwg.mxu0
    %v1028 = vmax.f32 %v1024, 0.0
    %v1029 = vmax.f32 %v1026, 0.0
    %v1030 = vpack.c.bf16 %v1029, %v1028
    %1031 = vmatpush.bf16.msra.mxu0 0
    %1032 = vmatpush.bf16.msra.mxu0 0
    %1033 = vmatpush.bf16.msra.mxu0 0
    %1034 = vmatpush.bf16.msra.mxu0 0
    %1035 = vmatpush.bf16.msra.mxu0 0
    %1036 = vmatpush.bf16.msra.mxu0 0
    %1037 = vmatpush.bf16.msra.mxu0 0
    %1038 = vmatpush.bf16.msra.mxu0 %v1030
    %1039 = vmatmul.bf16.gmra.mxu0 %v638
    %v1040 = vpop.f32.mrf.mxu0
    %v1041 = vadd.f32 %v610, %v1040
    %v1042 = vpop.f32.mrf.mxu0
    %v1043 = vadd.f32 %v615, %v1042
    %1044 = vmatmul.bf16.gmra.mxu0 %v641
    %v1045 = vpop.f32.mrf.mxu0
    %v1046 = vadd.f32 %v620, %v1045
    %v1047 = vpop.f32.mrf.mxu0
    %v1048 = vadd.f32 %v625, %v1047
    %1049 = vdwg.mxu0
    %v1050 = vmax.f32 %v1041, 0.0
    %v1051 = vmax.f32 %v1043, 0.0
    %v1052 = vmax.f32 %v1046, 0.0
    %v1053 = vmax.f32 %v1048, 0.0
    %v1054 = vmax.f32 %v1005, %v1050
    %v1055 = vmax.f32 %v1006, %v1051
    %v1056 = vmax.f32 %v1007, %v1052
    %v1057 = vmax.f32 %v1008, %v1053
    %s1058 = scalar_lea.vmem %s1, 36
    %v1059 = vld [vmem:[%s1058] sm:$0xf]
    %v1061 = vand.u32 %v1059, %v120
    %1063 = vmatpush.bf16.msra.mxu0 0
    %1064 = vmatpush.bf16.msra.mxu0 0
    %1065 = vmatpush.bf16.msra.mxu0 0
    %1066 = vmatpush.bf16.msra.mxu0 0
    %1067 = vmatpush.bf16.msra.mxu0 0
    %1068 = vmatpush.bf16.msra.mxu0 0
    %1069 = vmatpush.bf16.msra.mxu0 0
    %1070 = vmatpush.bf16.msra.mxu0 %v1061
    %1071 = vmatmul.bf16.gmra.mxu0 %v577
    %v1072 = vpop.f32.mrf.mxu0
    %v1073 = vadd.f32 %v564, %v1072
    %v1074 = vpop.f32.mrf.mxu0
    %v1075 = vadd.f32 %v569, %v1074
    %1076 = vdwg.mxu0
    %v1077 = vmax.f32 %v1073, 0.0
    %v1078 = vmax.f32 %v1075, 0.0
    %v1079 = vpack.c.bf16 %v1078, %v1077
    %1080 = vmatpush.bf16.msra.mxu0 0
    %1081 = vmatpush.bf16.msra.mxu0 0
    %1082 = vmatpush.bf16.msra.mxu0 0
    %1083 = vmatpush.bf16.msra.mxu0 0
    %1084 = vmatpush.bf16.msra.mxu0 0
    %1085 = vmatpush.bf16.msra.mxu0 0
    %1086 = vmatpush.bf16.msra.mxu0 0
    %1087 = vmatpush.bf16.msra.mxu0 %v1079
    %1088 = vmatmul.bf16.gmra.mxu0 %v638
    %v1089 = vpop.f32.mrf.mxu0
    %v1090 = vadd.f32 %v610, %v1089
    %v1091 = vpop.f32.mrf.mxu0
    %v1092 = vadd.f32 %v615, %v1091
    %1093 = vmatmul.bf16.gmra.mxu0 %v641
    %v1094 = vpop.f32.mrf.mxu0
    %v1095 = vadd.f32 %v620, %v1094
    %v1096 = vpop.f32.mrf.mxu0
    %v1097 = vadd.f32 %v625, %v1096
    %1098 = vdwg.mxu0
    %v1099 = vmax.f32 %v1090, 0.0
    %v1100 = vmax.f32 %v1092, 0.0
    %v1101 = vmax.f32 %v1095, 0.0
    %v1102 = vmax.f32 %v1097, 0.0
    %v1103 = vmax.f32 %v1054, %v1099
    %v1104 = vmax.f32 %v1055, %v1100
    %v1105 = vmax.f32 %v1056, %v1101
    %v1106 = vmax.f32 %v1057, %v1102
    %s1107 = scalar_lea.vmem %s1, 40
    %v1108 = vld [vmem:[%s1107] sm:$0xf]
    %v1110 = vand.u32 %v1108, %v120
    %1112 = vmatpush.bf16.msra.mxu0 0
    %1113 = vmatpush.bf16.msra.mxu0 0
    %1114 = vmatpush.bf16.msra.mxu0 0
    %1115 = vmatpush.bf16.msra.mxu0 0
    %1116 = vmatpush.bf16.msra.mxu0 0
    %1117 = vmatpush.bf16.msra.mxu0 0
    %1118 = vmatpush.bf16.msra.mxu0 0
    %1119 = vmatpush.bf16.msra.mxu0 %v1110
    %1120 = vmatmul.bf16.gmra.mxu0 %v577
    %v1121 = vpop.f32.mrf.mxu0
    %v1122 = vadd.f32 %v564, %v1121
    %v1123 = vpop.f32.mrf.mxu0
    %v1124 = vadd.f32 %v569, %v1123
    %1125 = vdwg.mxu0
    %v1126 = vmax.f32 %v1122, 0.0
    %v1127 = vmax.f32 %v1124, 0.0
    %v1128 = vpack.c.bf16 %v1127, %v1126
    %1129 = vmatpush.bf16.msra.mxu0 0
    %1130 = vmatpush.bf16.msra.mxu0 0
    %1131 = vmatpush.bf16.msra.mxu0 0
    %1132 = vmatpush.bf16.msra.mxu0 0
    %1133 = vmatpush.bf16.msra.mxu0 0
    %1134 = vmatpush.bf16.msra.mxu0 0
    %1135 = vmatpush.bf16.msra.mxu0 0
    %1136 = vmatpush.bf16.msra.mxu0 %v1128
    %1137 = vmatmul.bf16.gmra.mxu0 %v638
    %v1138 = vpop.f32.mrf.mxu0
    %v1139 = vadd.f32 %v610, %v1138
    %v1140 = vpop.f32.mrf.mxu0
    %v1141 = vadd.f32 %v615, %v1140
    %1142 = vmatmul.bf16.gmra.mxu0 %v641
    %v1143 = vpop.f32.mrf.mxu0
    %v1144 = vadd.f32 %v620, %v1143
    %v1145 = vpop.f32.mrf.mxu0
    %v1146 = vadd.f32 %v625, %v1145
    %1147 = vdwg.mxu0
    %v1148 = vmax.f32 %v1139, 0.0
    %v1149 = vmax.f32 %v1141, 0.0
    %v1150 = vmax.f32 %v1144, 0.0
    %v1151 = vmax.f32 %v1146, 0.0
    %v1152 = vmax.f32 %v1103, %v1148
    %v1153 = vmax.f32 %v1104, %v1149
    %v1154 = vmax.f32 %v1105, %v1150
    %v1155 = vmax.f32 %v1106, %v1151
    %s1156 = scalar_lea.vmem %s1, 44
    %v1157 = vld [vmem:[%s1156] sm:$0xf]
    %v1159 = vand.u32 %v1157, %v120
    %1161 = vmatpush.bf16.msra.mxu0 0
    %1162 = vmatpush.bf16.msra.mxu0 0
    %1163 = vmatpush.bf16.msra.mxu0 0
    %1164 = vmatpush.bf16.msra.mxu0 0
    %1165 = vmatpush.bf16.msra.mxu0 0
    %1166 = vmatpush.bf16.msra.mxu0 0
    %1167 = vmatpush.bf16.msra.mxu0 0
    %1168 = vmatpush.bf16.msra.mxu0 %v1159
    %1169 = vmatmul.bf16.gmra.mxu0 %v577
    %v1170 = vpop.f32.mrf.mxu0
    %v1171 = vadd.f32 %v564, %v1170
    %v1172 = vpop.f32.mrf.mxu0
    %v1173 = vadd.f32 %v569, %v1172
    %1174 = vdwg.mxu0
    %v1175 = vmax.f32 %v1171, 0.0
    %v1176 = vmax.f32 %v1173, 0.0
    %v1177 = vpack.c.bf16 %v1176, %v1175
    %1178 = vmatpush.bf16.msra.mxu0 0
    %1179 = vmatpush.bf16.msra.mxu0 0
    %1180 = vmatpush.bf16.msra.mxu0 0
    %1181 = vmatpush.bf16.msra.mxu0 0
    %1182 = vmatpush.bf16.msra.mxu0 0
    %1183 = vmatpush.bf16.msra.mxu0 0
    %1184 = vmatpush.bf16.msra.mxu0 0
    %1185 = vmatpush.bf16.msra.mxu0 %v1177
    %1186 = vmatmul.bf16.gmra.mxu0 %v638
    %v1187 = vpop.f32.mrf.mxu0
    %v1188 = vadd.f32 %v610, %v1187
    %v1189 = vpop.f32.mrf.mxu0
    %v1190 = vadd.f32 %v615, %v1189
    %1191 = vmatmul.bf16.gmra.mxu0 %v641
    %v1192 = vpop.f32.mrf.mxu0
    %v1193 = vadd.f32 %v620, %v1192
    %v1194 = vpop.f32.mrf.mxu0
    %v1195 = vadd.f32 %v625, %v1194
    %1196 = vdwg.mxu0
    %v1197 = vmax.f32 %v1188, 0.0
    %v1198 = vmax.f32 %v1190, 0.0
    %v1199 = vmax.f32 %v1193, 0.0
    %v1200 = vmax.f32 %v1195, 0.0
    %v1201 = vmax.f32 %v1152, %v1197
    %v1202 = vmax.f32 %v1153, %v1198
    %v1203 = vmax.f32 %v1154, %v1199
    %v1204 = vmax.f32 %v1155, %v1200
    %s1205 = scalar_lea.vmem %s1, 48
    %v1206 = vld [vmem:[%s1205] sm:$0xf]
    %v1208 = vand.u32 %v1206, %v120
    %1210 = vmatpush.bf16.msra.mxu0 0
    %1211 = vmatpush.bf16.msra.mxu0 0
    %1212 = vmatpush.bf16.msra.mxu0 0
    %1213 = vmatpush.bf16.msra.mxu0 0
    %1214 = vmatpush.bf16.msra.mxu0 0
    %1215 = vmatpush.bf16.msra.mxu0 0
    %1216 = vmatpush.bf16.msra.mxu0 0
    %1217 = vmatpush.bf16.msra.mxu0 %v1208
    %1218 = vmatmul.bf16.gmra.mxu0 %v577
    %v1219 = vpop.f32.mrf.mxu0
    %v1220 = vadd.f32 %v564, %v1219
    %v1221 = vpop.f32.mrf.mxu0
    %v1222 = vadd.f32 %v569, %v1221
    %1223 = vdwg.mxu0
    %v1224 = vmax.f32 %v1220, 0.0
    %v1225 = vmax.f32 %v1222, 0.0
    %v1226 = vpack.c.bf16 %v1225, %v1224
    %1227 = vmatpush.bf16.msra.mxu0 0
    %1228 = vmatpush.bf16.msra.mxu0 0
    %1229 = vmatpush.bf16.msra.mxu0 0
    %1230 = vmatpush.bf16.msra.mxu0 0
    %1231 = vmatpush.bf16.msra.mxu0 0
    %1232 = vmatpush.bf16.msra.mxu0 0
    %1233 = vmatpush.bf16.msra.mxu0 0
    %1234 = vmatpush.bf16.msra.mxu0 %v1226
    %1235 = vmatmul.bf16.gmra.mxu0 %v638
    %v1236 = vpop.f32.mrf.mxu0
    %v1237 = vadd.f32 %v610, %v1236
    %v1238 = vpop.f32.mrf.mxu0
    %v1239 = vadd.f32 %v615, %v1238
    %1240 = vmatmul.bf16.gmra.mxu0 %v641
    %v1241 = vpop.f32.mrf.mxu0
    %v1242 = vadd.f32 %v620, %v1241
    %v1243 = vpop.f32.mrf.mxu0
    %v1244 = vadd.f32 %v625, %v1243
    %1245 = vdwg.mxu0
    %v1246 = vmax.f32 %v1237, 0.0
    %v1247 = vmax.f32 %v1239, 0.0
    %v1248 = vmax.f32 %v1242, 0.0
    %v1249 = vmax.f32 %v1244, 0.0
    %v1250 = vmax.f32 %v1201, %v1246
    %v1251 = vmax.f32 %v1202, %v1247
    %v1252 = vmax.f32 %v1203, %v1248
    %v1253 = vmax.f32 %v1204, %v1249
    %s1254 = scalar_lea.vmem %s1, 52
    %v1255 = vld [vmem:[%s1254] sm:$0xf]
    %v1257 = vand.u32 %v1255, %v120
    %1259 = vmatpush.bf16.msra.mxu0 0
    %1260 = vmatpush.bf16.msra.mxu0 0
    %1261 = vmatpush.bf16.msra.mxu0 0
    %1262 = vmatpush.bf16.msra.mxu0 0
    %1263 = vmatpush.bf16.msra.mxu0 0
    %1264 = vmatpush.bf16.msra.mxu0 0
    %1265 = vmatpush.bf16.msra.mxu0 0
    %1266 = vmatpush.bf16.msra.mxu0 %v1257
    %1267 = vmatmul.bf16.gmra.mxu0 %v577
    %v1268 = vpop.f32.mrf.mxu0
    %v1269 = vadd.f32 %v564, %v1268
    %v1270 = vpop.f32.mrf.mxu0
    %v1271 = vadd.f32 %v569, %v1270
    %1272 = vdwg.mxu0
    %v1273 = vmax.f32 %v1269, 0.0
    %v1274 = vmax.f32 %v1271, 0.0
    %v1275 = vpack.c.bf16 %v1274, %v1273
    %1276 = vmatpush.bf16.msra.mxu0 0
    %1277 = vmatpush.bf16.msra.mxu0 0
    %1278 = vmatpush.bf16.msra.mxu0 0
    %1279 = vmatpush.bf16.msra.mxu0 0
    %1280 = vmatpush.bf16.msra.mxu0 0
    %1281 = vmatpush.bf16.msra.mxu0 0
    %1282 = vmatpush.bf16.msra.mxu0 0
    %1283 = vmatpush.bf16.msra.mxu0 %v1275
    %1284 = vmatmul.bf16.gmra.mxu0 %v638
    %v1285 = vpop.f32.mrf.mxu0
    %v1286 = vadd.f32 %v610, %v1285
    %v1287 = vpop.f32.mrf.mxu0
    %v1288 = vadd.f32 %v615, %v1287
    %1289 = vmatmul.bf16.gmra.mxu0 %v641
    %v1290 = vpop.f32.mrf.mxu0
    %v1291 = vadd.f32 %v620, %v1290
    %v1292 = vpop.f32.mrf.mxu0
    %v1293 = vadd.f32 %v625, %v1292
    %1294 = vdwg.mxu0
    %v1295 = vmax.f32 %v1286, 0.0
    %v1296 = vmax.f32 %v1288, 0.0
    %v1297 = vmax.f32 %v1291, 0.0
    %v1298 = vmax.f32 %v1293, 0.0
    %v1299 = vmax.f32 %v1250, %v1295
    %v1300 = vmax.f32 %v1251, %v1296
    %v1301 = vmax.f32 %v1252, %v1297
    %v1302 = vmax.f32 %v1253, %v1298
    %s1303 = scalar_lea.vmem %s1, 56
    %v1304 = vld [vmem:[%s1303] sm:$0xf]
    %v1306 = vand.u32 %v1304, %v120
    %1308 = vmatpush.bf16.msra.mxu0 0
    %1309 = vmatpush.bf16.msra.mxu0 0
    %1310 = vmatpush.bf16.msra.mxu0 0
    %1311 = vmatpush.bf16.msra.mxu0 0
    %1312 = vmatpush.bf16.msra.mxu0 0
    %1313 = vmatpush.bf16.msra.mxu0 0
    %1314 = vmatpush.bf16.msra.mxu0 0
    %1315 = vmatpush.bf16.msra.mxu0 %v1306
    %1316 = vmatmul.bf16.gmra.mxu0 %v577
    %v1317 = vpop.f32.mrf.mxu0
    %v1318 = vadd.f32 %v564, %v1317
    %v1319 = vpop.f32.mrf.mxu0
    %v1320 = vadd.f32 %v569, %v1319
    %1321 = vdwg.mxu0
    %v1322 = vmax.f32 %v1318, 0.0
    %v1323 = vmax.f32 %v1320, 0.0
    %v1324 = vpack.c.bf16 %v1323, %v1322
    %1325 = vmatpush.bf16.msra.mxu0 0
    %1326 = vmatpush.bf16.msra.mxu0 0
    %1327 = vmatpush.bf16.msra.mxu0 0
    %1328 = vmatpush.bf16.msra.mxu0 0
    %1329 = vmatpush.bf16.msra.mxu0 0
    %1330 = vmatpush.bf16.msra.mxu0 0
    %1331 = vmatpush.bf16.msra.mxu0 0
    %1332 = vmatpush.bf16.msra.mxu0 %v1324
    %1333 = vmatmul.bf16.gmra.mxu0 %v638
    %v1334 = vpop.f32.mrf.mxu0
    %v1335 = vadd.f32 %v610, %v1334
    %v1336 = vpop.f32.mrf.mxu0
    %v1337 = vadd.f32 %v615, %v1336
    %1338 = vmatmul.bf16.gmra.mxu0 %v641
    %v1339 = vpop.f32.mrf.mxu0
    %v1340 = vadd.f32 %v620, %v1339
    %v1341 = vpop.f32.mrf.mxu0
    %v1342 = vadd.f32 %v625, %v1341
    %1343 = vdwg.mxu0
    %v1344 = vmax.f32 %v1335, 0.0
    %v1345 = vmax.f32 %v1337, 0.0
    %v1346 = vmax.f32 %v1340, 0.0
    %v1347 = vmax.f32 %v1342, 0.0
    %v1348 = vmax.f32 %v1299, %v1344
    %v1349 = vmax.f32 %v1300, %v1345
    %v1350 = vmax.f32 %v1301, %v1346
    %v1351 = vmax.f32 %v1302, %v1347
    %s1352 = scalar_lea.vmem %s1, 60
    %v1353 = vld [vmem:[%s1352] sm:$0xf]
    %v1355 = vand.u32 %v1353, %v120
    %1357 = vmatpush.bf16.msra.mxu0 0
    %1358 = vmatpush.bf16.msra.mxu0 0
    %1359 = vmatpush.bf16.msra.mxu0 0
    %1360 = vmatpush.bf16.msra.mxu0 0
    %1361 = vmatpush.bf16.msra.mxu0 0
    %1362 = vmatpush.bf16.msra.mxu0 0
    %1363 = vmatpush.bf16.msra.mxu0 0
    %1364 = vmatpush.bf16.msra.mxu0 %v1355
    %1365 = vmatmul.bf16.gmra.mxu0 %v577
    %v1366 = vpop.f32.mrf.mxu0
    %v1367 = vadd.f32 %v564, %v1366
    %v1368 = vpop.f32.mrf.mxu0
    %v1369 = vadd.f32 %v569, %v1368
    %1370 = vdwg.mxu0
    %v1371 = vmax.f32 %v1367, 0.0
    %v1372 = vmax.f32 %v1369, 0.0
    %v1373 = vpack.c.bf16 %v1372, %v1371
    %1374 = vmatpush.bf16.msra.mxu0 0
    %1375 = vmatpush.bf16.msra.mxu0 0
    %1376 = vmatpush.bf16.msra.mxu0 0
    %1377 = vmatpush.bf16.msra.mxu0 0
    %1378 = vmatpush.bf16.msra.mxu0 0
    %1379 = vmatpush.bf16.msra.mxu0 0
    %1380 = vmatpush.bf16.msra.mxu0 0
    %1381 = vmatpush.bf16.msra.mxu0 %v1373
    %1382 = vmatmul.bf16.gmra.mxu0 %v638
    %v1383 = vpop.f32.mrf.mxu0
    %v1384 = vadd.f32 %v610, %v1383
    %v1385 = vpop.f32.mrf.mxu0
    %v1386 = vadd.f32 %v615, %v1385
    %1387 = vmatmul.bf16.gmra.mxu0 %v641
    %v1388 = vpop.f32.mrf.mxu0
    %v1389 = vadd.f32 %v620, %v1388
    %v1390 = vpop.f32.mrf.mxu0
    %v1391 = vadd.f32 %v625, %v1390
    %1392 = vdwg.mxu0
    %v1393 = vmax.f32 %v1384, 0.0
    %v1394 = vmax.f32 %v1386, 0.0
    %v1395 = vmax.f32 %v1389, 0.0
    %v1396 = vmax.f32 %v1391, 0.0
    %v1397 = vmax.f32 %v1348, %v1393
    %v1398 = vmax.f32 %v1349, %v1394
    %v1399 = vmax.f32 %v1350, %v1395
    %v1400 = vmax.f32 %v1351, %v1396
    %v1401 = vpack.c.bf16 %v1397, %v1397
    %v1402 = vpack.c.bf16 %v1398, %v1398
    %v1403 = vpack.c.bf16 %v1399, %v1399
    %v1404 = vpack.c.bf16 %v1400, %v1400
    %v1409 = vunpack.c.l.b16 %v552
    %v1410 = vunpack.c.l.b16 %v553
    %v1411 = vunpack.c.l.b16 %v554
    %v1412 = vunpack.c.l.b16 %v555
    %v1413 = vpack.c.b16 %v1410, %v1409
    %v1414 = vpack.c.b16 %v1412, %v1411
    %v1421 = vunpack.c.l.b16 %v1401
    %v1422 = vunpack.c.l.b16 %v1402
    %v1423 = vunpack.c.l.b16 %v1403
    %v1424 = vunpack.c.l.b16 %v1404
    %v1425 = vpack.c.b16 %v1422, %v1421
    %v1426 = vpack.c.b16 %v1424, %v1423
    %v1429 = vld [vmem:[%s11] sm:$0xf]
    %v1430 = vld [vmem:[%s11 + $0x4] sm:$0xf]
    %v1431 = vld [vmem:[%s11 + $0x8] sm:$0xf]
    %v1432 = vld [vmem:[%s11 + $0xc] sm:$0xf]
    %v1437 = vunpack.c.l.b16 %v1429
    %v1438 = vunpack.c.l.b16 %v1430
    %v1439 = vunpack.c.l.b16 %v1431
    %v1440 = vunpack.c.l.b16 %v1432
    %v1441 = vpack.c.b16 %v1438, %v1437
    %v1442 = vpack.c.b16 %v1440, %v1439
    %vm1443 = vcmask 261120
    %v1445 = vsel %vm1443, %v1441, 0
    %v1448 = vsel %vm1443, %v1442, 0
    %1450 = vmatpush.bf16.msra.mxu0 0
    %1451 = vmatpush.bf16.msra.mxu0 0
    %1452 = vmatpush.bf16.msra.mxu0 0
    %1453 = vmatpush.bf16.msra.mxu0 0
    %1454 = vmatpush.bf16.msra.mxu0 0
    %1455 = vmatpush.bf16.msra.mxu0 0
    %1456 = vmatpush.bf16.msra.mxu0 %v1414
    %1457 = vmatpush.bf16.msra.mxu0 %v1413
    %1458 = vmatmul.bf16.gmra.mxu0 %v1445
    %v1459 = vpop.f32.mrf.mxu0
    %v1460 = vadd.f32 %v85, %v1459
    %v1461 = vpop.f32.mrf.mxu0
    %v1462 = vadd.f32 %v87, %v1461
    %1463 = vmatmul.bf16.gmra.mxu0 %v1448
    %v1464 = vpop.f32.mrf.mxu0
    %v1465 = vadd.f32 %v90, %v1464
    %v1466 = vpop.f32.mrf.mxu0
    %v1467 = vadd.f32 %v92, %v1466
    %1468 = vdwg.mxu0
    %1469 = vmatpush.bf16.msra.mxu0 0
    %1470 = vmatpush.bf16.msra.mxu0 0
    %1471 = vmatpush.bf16.msra.mxu0 0
    %1472 = vmatpush.bf16.msra.mxu0 0
    %1473 = vmatpush.bf16.msra.mxu0 0
    %1474 = vmatpush.bf16.msra.mxu0 0
    %1475 = vmatpush.bf16.msra.mxu0 %v1426
    %1476 = vmatpush.bf16.msra.mxu0 %v1425
    %1477 = vmatmul.bf16.gmra.mxu0 %v1445
    %v1478 = vpop.f32.mrf.mxu0
    %v1479 = vadd.f32 %v85, %v1478
    %v1480 = vpop.f32.mrf.mxu0
    %v1481 = vadd.f32 %v87, %v1480
    %1482 = vmatmul.bf16.gmra.mxu0 %v1448
    %v1483 = vpop.f32.mrf.mxu0
    %v1484 = vadd.f32 %v90, %v1483
    %v1485 = vpop.f32.mrf.mxu0
    %v1486 = vadd.f32 %v92, %v1485
    %1487 = vdwg.mxu0
    %v1488 = vld [vmem:[%s13] sm:$0xff]
    %v1489 = vld [vmem:[%s13 + $0x8] sm:$0xff]
    %v1490 = vld [vmem:[%s13 + $0x10] sm:$0xff]
    %v1491 = vld [vmem:[%s13 + $0x18] sm:$0xff]
    %1493 = vset.pattern.permute.xlu0 0
    %1494 = vperm.xlu0 %1493, %v1488
    %v1495 = vpop.permute.xlu0 %1494
    %1498 = vset.pattern.permute.xlu0 0
    %1499 = vperm.xlu0 %1498, %v1489
    %v1500 = vpop.permute.xlu0 %1499
    %1503 = vset.pattern.permute.xlu0 0
    %1504 = vperm.xlu0 %1503, %v1490
    %v1505 = vpop.permute.xlu0 %1504
    %1508 = vset.pattern.permute.xlu0 0
    %1509 = vperm.xlu0 %1508, %v1491
    %v1510 = vpop.permute.xlu0 %1509
    %v1512 = vadd.f32 %v1460, %v1495
    %v1513 = vadd.f32 %v1479, %v1495
    %v1514 = vadd.f32 %v1462, %v1500
    %v1515 = vadd.f32 %v1481, %v1500
    %v1516 = vadd.f32 %v1465, %v1505
    %v1517 = vadd.f32 %v1484, %v1505
    %v1518 = vadd.f32 %v1467, %v1510
    %v1519 = vadd.f32 %v1486, %v1510
    %v1520 = vmax.f32 %v1512, 0.0
    %v1521 = vmax.f32 %v1513, 0.0
    %v1522 = vmax.f32 %v1514, 0.0
    %v1523 = vmax.f32 %v1515, 0.0
    %v1524 = vmax.f32 %v1516, 0.0
    %v1525 = vmax.f32 %v1517, 0.0
    %v1526 = vmax.f32 %v1518, 0.0
    %v1527 = vmax.f32 %v1519, 0.0
    %1528 = vst [vmem:[#allocation2] sm:$0xff] %v1520
    %1529 = vst [vmem:[#allocation2 + $0x8] sm:$0xff] %v1522
    %1530 = vst [vmem:[#allocation2 + $0x10] sm:$0xff] %v1524
    %1531 = vst [vmem:[#allocation2 + $0x18] sm:$0xff] %v1526
    %1532 = vst [vmem:[#allocation2 + $0x20] sm:$0xff] %v1521
    %1533 = vst [vmem:[#allocation2 + $0x28] sm:$0xff] %v1523
    %1534 = vst [vmem:[#allocation2 + $0x30] sm:$0xff] %v1525
    %1535 = vst [vmem:[#allocation2 + $0x38] sm:$0xff] %v1527
    // Predicated region
    $region58: #{tpu_custom_call.1} parent=1 // pred_check
      _
    $region59: #{tpu_custom_call.1} parent=1 // pred_check_branch
      %1537 = sbr.rel (0) target = $region61
    $region60: #{tpu_custom_call.1} parent=1 // pred_region
      %1539 = vsyncadd [#allocation3], 0
      %s1540 = sshll.u32 [#allocation2], 4
      %s1541 = int_to_ptr.vmem [resolvable:$true] %s1540
      %s1542 = sshll.u32 %s14, 4
      %s1543 = int_to_ptr.hbm [resolvable:$true] %s1542
      %1548 = dma.vmem_to_hbm [thread:$0]  %s1541, 1024, %s1543, [#allocation3], 128, 128, 8
    $region61: #{tpu_custom_call.1} parent=1 // pred_fallthru
      _
    // Predicated region
    $region62: #{tpu_custom_call.1} parent=1 // pred_check
      _
    $region63: #{tpu_custom_call.1} parent=1 // pred_check_branch
      %1550 = sbr.rel (0) target = $region65
    $region64: #{tpu_custom_call.1} parent=1 // pred_region
      %1552 = dma.done [#allocation3], 1024
    $region65: #{tpu_custom_call.1} parent=1 // pred_fallthru
      _
    %1553 = vsyncpa [#allocation3], 1

</llo_original>
